<compile_context>
chip_gen: v5e
topology: v5e:2x2
jax: 0.10.0
libtpu: 0.0.40
codegen_flags: <defaults>
</compile_context>

<pallas_src>
import jax
import jax.numpy as jnp
from jax.experimental import pallas as pl
from jax.experimental.pallas import tpu as pltpu


def _rup(n, m):
    return ((n + m - 1) // m) * m


def _make_kernel(k_sizes, v_pad):
    """Kernel closure over static conv kernel sizes and padded vocab size."""
    k1, k2, k3 = k_sizes

    def kernel(tok_ref, w1_ref, a1_ref, w2_ref, a2_ref, w3_ref, a3_ref,
               out_ref):
        # tok_ref : (Bblk, 1, Lp) int32
        # w*_ref  : (Cout_p, k*Cin_p) im2col weights (layer 1 has embedding folded in)
        # a*_ref  : (Cout_p, 3) columns = [conv bias, BN scale, BN shift]
        # out_ref : (Bblk, F3_p, L3_pad)
        b_blk = tok_ref.shape[0]
        l_pad = tok_ref.shape[2]

        # Load grid-invariant weights once per grid step (hoisted out of the
        # per-sample loop).
        w1 = w1_ref[...]
        a1 = a1_ref[...]
        w2 = w2_ref[...]
        a2 = a2_ref[...]
        w3 = w3_ref[...]
        a3 = a3_ref[...]

        def layer(x, k, w, a):
            # x: (Cin_p, Lin) channels-first activations.
            l_out = x.shape[1] - k + 1
            # im2col: stack the k lane-shifted slices along the channel axis.
            xcat = jnp.concatenate(
                [x[:, dk:dk + l_out] for dk in range(k)], axis=0)
            y = jnp.dot(w, xcat, preferred_element_type=jnp.float32)
            bias = a[:, 0:1]
            scale = a[:, 1:2]
            shift = a[:, 2:3]
            return jnp.maximum(y + bias, 0.0) * scale + shift

        vocab_iota = jax.lax.broadcasted_iota(jnp.int32, (v_pad, l_pad), 0)

        for s in range(b_blk):                      # static unroll over block
            tok = tok_ref[s]                        # (1, Lp) int32
            onehot = (vocab_iota == tok).astype(jnp.float32)   # (Vp, Lp)
            h = layer(onehot, k1, w1, a1)           # embedding folded into w1
            h = layer(h, k2, w2, a2)
            h = layer(h, k3, w3, a3)                # (F3_p, L3_pad)
            out_ref[s] = h                          # lane-dense store

    return kernel


def protein_cnn(tokens, emb_table,
                conv_weights, conv_biases,
                bn_gamma, bn_beta, bn_mean, bn_var,
                *, eps=1e-5, batch_block=8):
    """Eval-mode ProteinCNN forward.

    tokens:       (B, L) int32 in [0, 26)
    emb_table:    (V, E) float32
    conv_weights: list of 3 arrays (Cout, Cin, k)   (PyTorch Conv1d layout)
    conv_biases:  list of 3 arrays (Cout,)
    bn_*:         list of 3 arrays (Cout,)          (eval-mode running stats)
    returns       (B, L3, F3) float32, matching `v.view(B, L3, -1)` exactly.
    """
    B, L = tokens.shape
    V, E = emb_table.shape
    ks = [int(w.shape[2]) for w in conv_weights]
    F = [int(w.shape[0]) for w in conv_weights]
    assert len(ks) == 3

    # Pad the sequence so the FINAL conv output width is a multiple of 128
    # (lane-dense output stores).  Only the first L3_true columns are valid.
    l3_true = L - sum(ks) + len(ks)
    assert l3_true >= 1
    l3_pad = _rup(l3_true, 128)
    l_pad = l3_pad + sum(ks) - len(ks)

    v_pad = _rup(V, 8)
    f_pad = [_rup(f, 8) for f in F]

    b_blk = max(1, min(B, batch_block))
    b_pad = _rup(B, b_blk)

    tok = jnp.asarray(tokens, jnp.int32)
    tok = jnp.pad(tok, ((0, b_pad - B), (0, l_pad - L)))   # pad with token 0
    tok3 = tok.reshape(b_pad, 1, l_pad)

    embT = jnp.asarray(emb_table, jnp.float32).T            # (E, V)
    HIGH = jax.lax.Precision.HIGHEST

    # ---- Layer 1: fold embedding into the conv taps, build im2col weights ----
    w1 = jnp.asarray(conv_weights[0], jnp.float32)           # (F1, E, k1)
    wcat1 = jnp.zeros((f_pad[0], ks[0] * v_pad), jnp.float32)
    for dk in range(ks[0]):
        tap = jnp.einsum('oe,ev->ov', w1[:, :, dk], embT, precision=HIGH)
        wcat1 = wcat1.at[:F[0], dk * v_pad:dk * v_pad + V].set(tap)

    def build_wcat(w, cin_true, cin_pad, cout_true, cout_pad):
        w = jnp.asarray(w, jnp.float32)                       # (Cout, Cin, k)
        k = w.shape[2]
        out = jnp.zeros((cout_pad, k * cin_pad), jnp.float32)
        for dk in range(k):
            out = out.at[:cout_true,
                         dk * cin_pad:dk * cin_pad + cin_true].set(w[:, :, dk])
        return out

    wcat2 = build_wcat(conv_weights[1], F[0], f_pad[0], F[1], f_pad[1])
    wcat3 = build_wcat(conv_weights[2], F[1], f_pad[1], F[2], f_pad[2])

    def build_aff(b, g, bt, m, v, f_true, fp):
        s = jnp.asarray(g, jnp.float32) / jnp.sqrt(jnp.asarray(v, jnp.float32) + eps)
        t = jnp.asarray(bt, jnp.float32) - jnp.asarray(m, jnp.float32) * s
        aff = jnp.zeros((fp, 3), jnp.float32)
        aff = aff.at[:f_true, 0].set(jnp.asarray(b, jnp.float32))
        aff = aff.at[:f_true, 1].set(s)
        aff = aff.at[:f_true, 2].set(t)
        return aff

    a1 = build_aff(conv_biases[0], bn_gamma[0], bn_beta[0], bn_mean[0], bn_var[0], F[0], f_pad[0])
    a2 = build_aff(conv_biases[1], bn_gamma[1], bn_beta[1], bn_mean[1], bn_var[1], F[1], f_pad[1])
    a3 = build_aff(conv_biases[2], bn_gamma[2], bn_beta[2], bn_mean[2], bn_var[2], F[2], f_pad[2])

    kernel = _make_kernel(tuple(ks), v_pad)

    # VMEM budget: double-buffered streaming blocks + resident weights + headroom
    # for in-kernel im2col slabs.  Clamped to v7x's 64 MiB physical VMEM.
    block_bytes = 4 * (b_blk * l_pad + b_blk * f_pad[2] * l3_pad) \
        + 4 * int(wcat1.size + wcat2.size + wcat3.size + a1.size + a2.size + a3.size)
    vmem_limit = int(min(64 * 2**20, max(32 * 2**20, 6 * block_bytes)))

    grid_spec = pltpu.PrefetchScalarGridSpec(
        num_scalar_prefetch=0,
        grid=(b_pad // b_blk,),
        in_specs=[
            pl.BlockSpec((b_blk, 1, l_pad), lambda b: (b, 0, 0)),   # tokens (streamed)
            pl.BlockSpec(wcat1.shape, lambda b: (0, 0)),            # layer-1 weights (resident)
            pl.BlockSpec(a1.shape, lambda b: (0, 0)),
            pl.BlockSpec(wcat2.shape, lambda b: (0, 0)),
            pl.BlockSpec(a2.shape, lambda b: (0, 0)),
            pl.BlockSpec(wcat3.shape, lambda b: (0, 0)),
            pl.BlockSpec(a3.shape, lambda b: (0, 0)),
        ],
        out_specs=pl.BlockSpec((b_blk, f_pad[2], l3_pad), lambda b: (b, 0, 0)),
    )

    out_cf = pl.pallas_call(
        kernel,
        out_shape=jax.ShapeDtypeStruct((b_pad, f_pad[2], l3_pad), jnp.float32),
        grid_spec=grid_spec,
        compiler_params=pltpu.CompilerParams(
            dimension_semantics=("parallel",),
            vmem_limit_bytes=vmem_limit),
    )(tok3, wcat1, a1, wcat2, a2, wcat3, a3)

    # Slice off batch / channel / length padding, then reproduce PyTorch's
    # raw `.view(B, L3, -1)` reinterpretation of the contiguous (B, C, L) tensor.
    out_valid = out_cf[:B, :F[2], :l3_true]
    return out_valid.reshape(B, l3_true, F[2])


def _reference(tokens, emb_table, conv_weights, conv_biases,
               bn_gamma, bn_beta, bn_mean, bn_var, eps=1e-5):
    x = emb_table[tokens]                                          # (B, L, E)
    x = jnp.transpose(x, (0, 2, 1))                                # (B, E, L)
    for w, b, g, bt, m, var in zip(conv_weights, conv_biases,
                                   bn_gamma, bn_beta, bn_mean, bn_var):
        c_out, c_in, k = w.shape
        l_out = x.shape[2] - k + 1
        y = jnp.zeros((x.shape[0], c_out, l_out), jnp.float32)
        for dk in range(k):
            y = y + jnp.einsum('oi,bil->bol', w[:, :, dk],
                               x[:, :, dk:dk + l_out],
                               precision=jax.lax.Precision.HIGHEST)
        y = jnp.maximum(y + b[None, :, None], 0.0)
        s = g / jnp.sqrt(var + eps)
        t = bt - m * s
        x = y * s[None, :, None] + t[None, :, None]
    B, C, Lf = x.shape
    return x.reshape(B, Lf, C)                                     # == torch .view


if __name__ == "__main__":
    # Small shapes consistent with the module's forward.
    B, L = 2, 32
    V = 26
    embedding_dim = 16
    num_filters = [16, 32, 64]
    kernel_size = [3, 5, 7]

    key = jax.random.PRNGKey(0)
    keys = jax.random.split(key, 20)

    tokens = jax.random.randint(keys[0], (B, L), 0, V, dtype=jnp.int32)
    emb_table = jax.random.normal(keys[1], (V, embedding_dim), jnp.float32) * 0.5
    emb_table = emb_table.at[0].set(0.0)                           # padding_idx=0

    in_ch = [embedding_dim] + num_filters
    conv_ws, conv_bs = [], []
    bn_g, bn_b, bn_m, bn_v = [], [], [], []
    ki = 2
    for li in range(3):
        cin, cout, k = in_ch[li], in_ch[li + 1], kernel_size[li]
        scale = float(cin * k) ** -0.5
        conv_ws.append(jax.random.normal(keys[ki], (cout, cin, k), jnp.float32) * scale); ki += 1
        conv_bs.append(jax.random.normal(keys[ki], (cout,), jnp.float32) * 0.05); ki += 1
        bn_g.append(jax.random.uniform(keys[ki], (cout,), jnp.float32, 0.5, 1.5)); ki += 1
        bn_b.append(jax.random.normal(keys[ki], (cout,), jnp.float32) * 0.1); ki += 1
        bn_m.append(jax.random.normal(keys[ki], (cout,), jnp.float32) * 0.1); ki += 1
        bn_v.append(jax.random.uniform(keys[ki], (cout,), jnp.float32, 0.5, 1.5)); ki += 1

    out = protein_cnn(tokens, emb_table, conv_ws, conv_bs, bn_g, bn_b, bn_m, bn_v)
    jax.block_until_ready(out)

    ref = _reference(tokens, emb_table, conv_ws, conv_bs, bn_g, bn_b, bn_m, bn_v)
    L3 = L - sum(kernel_size) + len(kernel_size)
    assert out.shape == (B, L3, num_filters[-1]), out.shape
    assert jnp.allclose(out, ref, atol=1e-3, rtol=1e-3), "mismatch vs reference"

    print("KERNEL_OK")
</pallas_src>

<mosaic_0001>
module attributes {stable_mosaic.version = 11 : i64} {
  func.func @kernel(%arg0: i32, %arg1: memref<2x1x140xi32, #tpu.memory_space<vmem>>, %arg2: memref<16x96xf32, #tpu.memory_space<vmem>>, %arg3: memref<16x3xf32, #tpu.memory_space<vmem>>, %arg4: memref<32x80xf32, #tpu.memory_space<vmem>>, %arg5: memref<32x3xf32, #tpu.memory_space<vmem>>, %arg6: memref<64x224xf32, #tpu.memory_space<vmem>>, %arg7: memref<64x3xf32, #tpu.memory_space<vmem>>, %arg8: memref<2x64x128xf32, #tpu.memory_space<vmem>>) attributes {dimension_semantics = [#tpu.dimension_semantics<parallel>], iteration_bounds = array<i64: 1>, scalar_prefetch = 0 : i64, scratch_operands = 0 : i64, tpu.core_type = #tpu.core_type<tc>, window_params = [{transform_indices = @transform_0, window_bounds = array<i64: 2, 1, 140>}, {pipeline_mode = #tpu.pipeline_mode<synchronous>, transform_indices = @transform_1, window_bounds = array<i64: 16, 96>}, {pipeline_mode = #tpu.pipeline_mode<synchronous>, transform_indices = @transform_2, window_bounds = array<i64: 16, 3>}, {pipeline_mode = #tpu.pipeline_mode<synchronous>, transform_indices = @transform_3, window_bounds = array<i64: 32, 80>}, {pipeline_mode = #tpu.pipeline_mode<synchronous>, transform_indices = @transform_4, window_bounds = array<i64: 32, 3>}, {pipeline_mode = #tpu.pipeline_mode<synchronous>, transform_indices = @transform_5, window_bounds = array<i64: 64, 224>}, {pipeline_mode = #tpu.pipeline_mode<synchronous>, transform_indices = @transform_6, window_bounds = array<i64: 64, 3>}, {transform_indices = @transform_7, window_bounds = array<i64: 2, 64, 128>}]} {
    %c0 = arith.constant 0 : index
    %c0_0 = arith.constant 0 : index
    %0 = vector.load %arg2[%c0, %c0_0] : memref<16x96xf32, #tpu.memory_space<vmem>>, vector<16x96xf32>
    %c0_1 = arith.constant 0 : index
    %c0_2 = arith.constant 0 : index
    %1 = vector.load %arg3[%c0_1, %c0_2] : memref<16x3xf32, #tpu.memory_space<vmem>>, vector<16x3xf32>
    %c0_3 = arith.constant 0 : index
    %c0_4 = arith.constant 0 : index
    %2 = vector.load %arg4[%c0_3, %c0_4] : memref<32x80xf32, #tpu.memory_space<vmem>>, vector<32x80xf32>
    %c0_5 = arith.constant 0 : index
    %c0_6 = arith.constant 0 : index
    %3 = vector.load %arg5[%c0_5, %c0_6] : memref<32x3xf32, #tpu.memory_space<vmem>>, vector<32x3xf32>
    %c0_7 = arith.constant 0 : index
    %c0_8 = arith.constant 0 : index
    %4 = vector.load %arg6[%c0_7, %c0_8] : memref<64x224xf32, #tpu.memory_space<vmem>>, vector<64x224xf32>
    %c0_9 = arith.constant 0 : index
    %c0_10 = arith.constant 0 : index
    %5 = vector.load %arg7[%c0_9, %c0_10] : memref<64x3xf32, #tpu.memory_space<vmem>>, vector<64x3xf32>
    %6 = tpu.iota {dimensions = array<i32: 0>} : vector<32x140xi32>
    %c0_11 = arith.constant 0 : index
    %c0_12 = arith.constant 0 : index
    %c0_13 = arith.constant 0 : index
    %7 = vector.load %arg1[%c0_11, %c0_12, %c0_13] : memref<2x1x140xi32, #tpu.memory_space<vmem>>, vector<1x1x140xi32>
    %8 = vector.shape_cast %7 : vector<1x1x140xi32> to vector<1x140xi32>
    %9 = vector.broadcast %8 : vector<1x140xi32> to vector<32x140xi32>
    %10 = arith.cmpi eq, %6, %9 : vector<32x140xi32>
    %11 = arith.extui %10 : vector<32x140xi1> to vector<32x140xi32>
    %12 = arith.sitofp %11 : vector<32x140xi32> to vector<32x140xf32>
    %13 = vector.extract_strided_slice %12 {offsets = [0, 0], sizes = [32, 138], strides = [1, 1]} : vector<32x140xf32> to vector<32x138xf32>
    %14 = vector.extract_strided_slice %12 {offsets = [0, 1], sizes = [32, 138], strides = [1, 1]} : vector<32x140xf32> to vector<32x138xf32>
    %15 = vector.extract_strided_slice %12 {offsets = [0, 2], sizes = [32, 138], strides = [1, 1]} : vector<32x140xf32> to vector<32x138xf32>
    %16 = tpu.concatenate %13, %14, %15 in 0 : vector<32x138xf32>, vector<32x138xf32>, vector<32x138xf32> -> vector<96x138xf32>
    %cst = arith.constant dense<0.000000e+00> : vector<16x138xf32>
    %17 = tpu.matmul %0, %16, %cst {dimension_numbers = #tpu.dot_dimension_numbers<[1], [0], [0], [1], [0, 0, 1, 1], [], []>} : vector<16x96xf32>, vector<96x138xf32>, vector<16x138xf32> -> vector<16x138xf32>
    %18 = vector.extract_strided_slice %1 {offsets = [0, 0], sizes = [16, 1], strides = [1, 1]} : vector<16x3xf32> to vector<16x1xf32>
    %19 = vector.extract_strided_slice %1 {offsets = [0, 1], sizes = [16, 1], strides = [1, 1]} : vector<16x3xf32> to vector<16x1xf32>
    %20 = vector.extract_strided_slice %1 {offsets = [0, 2], sizes = [16, 1], strides = [1, 1]} : vector<16x3xf32> to vector<16x1xf32>
    %21 = vector.broadcast %18 : vector<16x1xf32> to vector<16x138xf32>
    %22 = arith.addf %17, %21 : vector<16x138xf32>
    %cst_14 = arith.constant 0.000000e+00 : f32
    %23 = vector.broadcast %cst_14 : f32 to vector<16x138xf32>
    %24 = arith.maximumf %22, %23 : vector<16x138xf32>
    %25 = vector.broadcast %19 : vector<16x1xf32> to vector<16x138xf32>
    %26 = arith.mulf %24, %25 : vector<16x138xf32>
    %27 = vector.broadcast %20 : vector<16x1xf32> to vector<16x138xf32>
    %28 = arith.addf %26, %27 : vector<16x138xf32>
    %29 = vector.extract_strided_slice %28 {offsets = [0, 0], sizes = [16, 134], strides = [1, 1]} : vector<16x138xf32> to vector<16x134xf32>
    %30 = vector.extract_strided_slice %28 {offsets = [0, 1], sizes = [16, 134], strides = [1, 1]} : vector<16x138xf32> to vector<16x134xf32>
    %31 = vector.extract_strided_slice %28 {offsets = [0, 2], sizes = [16, 134], strides = [1, 1]} : vector<16x138xf32> to vector<16x134xf32>
    %32 = vector.extract_strided_slice %28 {offsets = [0, 3], sizes = [16, 134], strides = [1, 1]} : vector<16x138xf32> to vector<16x134xf32>
    %33 = vector.extract_strided_slice %28 {offsets = [0, 4], sizes = [16, 134], strides = [1, 1]} : vector<16x138xf32> to vector<16x134xf32>
    %34 = tpu.concatenate %29, %30, %31, %32, %33 in 0 : vector<16x134xf32>, vector<16x134xf32>, vector<16x134xf32>, vector<16x134xf32>, vector<16x134xf32> -> vector<80x134xf32>
    %cst_15 = arith.constant dense<0.000000e+00> : vector<32x134xf32>
    %35 = tpu.matmul %2, %34, %cst_15 {dimension_numbers = #tpu.dot_dimension_numbers<[1], [0], [0], [1], [0, 0, 1, 1], [], []>} : vector<32x80xf32>, vector<80x134xf32>, vector<32x134xf32> -> vector<32x134xf32>
    %36 = vector.extract_strided_slice %3 {offsets = [0, 0], sizes = [32, 1], strides = [1, 1]} : vector<32x3xf32> to vector<32x1xf32>
    %37 = vector.extract_strided_slice %3 {offsets = [0, 1], sizes = [32, 1], strides = [1, 1]} : vector<32x3xf32> to vector<32x1xf32>
    %38 = vector.extract_strided_slice %3 {offsets = [0, 2], sizes = [32, 1], strides = [1, 1]} : vector<32x3xf32> to vector<32x1xf32>
    %39 = vector.broadcast %36 : vector<32x1xf32> to vector<32x134xf32>
    %40 = arith.addf %35, %39 : vector<32x134xf32>
    %cst_16 = arith.constant 0.000000e+00 : f32
    %41 = vector.broadcast %cst_16 : f32 to vector<32x134xf32>
    %42 = arith.maximumf %40, %41 : vector<32x134xf32>
    %43 = vector.broadcast %37 : vector<32x1xf32> to vector<32x134xf32>
    %44 = arith.mulf %42, %43 : vector<32x134xf32>
    %45 = vector.broadcast %38 : vector<32x1xf32> to vector<32x134xf32>
    %46 = arith.addf %44, %45 : vector<32x134xf32>
    %47 = vector.extract_strided_slice %46 {offsets = [0, 0], sizes = [32, 128], strides = [1, 1]} : vector<32x134xf32> to vector<32x128xf32>
    %48 = vector.extract_strided_slice %46 {offsets = [0, 1], sizes = [32, 128], strides = [1, 1]} : vector<32x134xf32> to vector<32x128xf32>
    %49 = vector.extract_strided_slice %46 {offsets = [0, 2], sizes = [32, 128], strides = [1, 1]} : vector<32x134xf32> to vector<32x128xf32>
    %50 = vector.extract_strided_slice %46 {offsets = [0, 3], sizes = [32, 128], strides = [1, 1]} : vector<32x134xf32> to vector<32x128xf32>
    %51 = vector.extract_strided_slice %46 {offsets = [0, 4], sizes = [32, 128], strides = [1, 1]} : vector<32x134xf32> to vector<32x128xf32>
    %52 = vector.extract_strided_slice %46 {offsets = [0, 5], sizes = [32, 128], strides = [1, 1]} : vector<32x134xf32> to vector<32x128xf32>
    %53 = vector.extract_strided_slice %46 {offsets = [0, 6], sizes = [32, 128], strides = [1, 1]} : vector<32x134xf32> to vector<32x128xf32>
    %54 = tpu.concatenate %47, %48, %49, %50, %51, %52, %53 in 0 : vector<32x128xf32>, vector<32x128xf32>, vector<32x128xf32>, vector<32x128xf32>, vector<32x128xf32>, vector<32x128xf32>, vector<32x128xf32> -> vector<224x128xf32>
    %cst_17 = arith.constant dense<0.000000e+00> : vector<64x128xf32>
    %55 = tpu.matmul %4, %54, %cst_17 {dimension_numbers = #tpu.dot_dimension_numbers<[1], [0], [0], [1], [0, 0, 1, 1], [], []>} : vector<64x224xf32>, vector<224x128xf32>, vector<64x128xf32> -> vector<64x128xf32>
    %56 = vector.extract_strided_slice %5 {offsets = [0, 0], sizes = [64, 1], strides = [1, 1]} : vector<64x3xf32> to vector<64x1xf32>
    %57 = vector.extract_strided_slice %5 {offsets = [0, 1], sizes = [64, 1], strides = [1, 1]} : vector<64x3xf32> to vector<64x1xf32>
    %58 = vector.extract_strided_slice %5 {offsets = [0, 2], sizes = [64, 1], strides = [1, 1]} : vector<64x3xf32> to vector<64x1xf32>
    %59 = vector.broadcast %56 : vector<64x1xf32> to vector<64x128xf32>
    %60 = arith.addf %55, %59 : vector<64x128xf32>
    %cst_18 = arith.constant 0.000000e+00 : f32
    %61 = vector.broadcast %cst_18 : f32 to vector<64x128xf32>
    %62 = arith.maximumf %60, %61 : vector<64x128xf32>
    %63 = vector.broadcast %57 : vector<64x1xf32> to vector<64x128xf32>
    %64 = arith.mulf %62, %63 : vector<64x128xf32>
    %65 = vector.broadcast %58 : vector<64x1xf32> to vector<64x128xf32>
    %66 = arith.addf %64, %65 : vector<64x128xf32>
    %c0_19 = arith.constant 0 : index
    %c0_20 = arith.constant 0 : index
    %c0_21 = arith.constant 0 : index
    %67 = vector.load %arg8[%c0_19, %c0_20, %c0_21] : memref<2x64x128xf32, #tpu.memory_space<vmem>>, vector<1x64x128xf32>
    %68 = vector.shape_cast %67 : vector<1x64x128xf32> to vector<64x128xf32>
    %69 = vector.shape_cast %66 : vector<64x128xf32> to vector<1x64x128xf32>
    tpu.vector_store %arg8[%c0_19, %c0_20, %c0_21], %69 {strides = array<i32>} : memref<2x64x128xf32, #tpu.memory_space<vmem>>, vector<1x64x128xf32>,
    %c1 = arith.constant 1 : index
    %c0_22 = arith.constant 0 : index
    %c0_23 = arith.constant 0 : index
    %70 = vector.load %arg1[%c1, %c0_22, %c0_23] : memref<2x1x140xi32, #tpu.memory_space<vmem>>, vector<1x1x140xi32>
    %71 = vector.shape_cast %70 : vector<1x1x140xi32> to vector<1x140xi32>
    %72 = vector.broadcast %71 : vector<1x140xi32> to vector<32x140xi32>
    %73 = arith.cmpi eq, %6, %72 : vector<32x140xi32>
    %74 = arith.extui %73 : vector<32x140xi1> to vector<32x140xi32>
    %75 = arith.sitofp %74 : vector<32x140xi32> to vector<32x140xf32>
    %76 = vector.extract_strided_slice %75 {offsets = [0, 0], sizes = [32, 138], strides = [1, 1]} : vector<32x140xf32> to vector<32x138xf32>
    %77 = vector.extract_strided_slice %75 {offsets = [0, 1], sizes = [32, 138], strides = [1, 1]} : vector<32x140xf32> to vector<32x138xf32>
    %78 = vector.extract_strided_slice %75 {offsets = [0, 2], sizes = [32, 138], strides = [1, 1]} : vector<32x140xf32> to vector<32x138xf32>
    %79 = tpu.concatenate %76, %77, %78 in 0 : vector<32x138xf32>, vector<32x138xf32>, vector<32x138xf32> -> vector<96x138xf32>
    %cst_24 = arith.constant dense<0.000000e+00> : vector<16x138xf32>
    %80 = tpu.matmul %0, %79, %cst_24 {dimension_numbers = #tpu.dot_dimension_numbers<[1], [0], [0], [1], [0, 0, 1, 1], [], []>} : vector<16x96xf32>, vector<96x138xf32>, vector<16x138xf32> -> vector<16x138xf32>
    %81 = vector.extract_strided_slice %1 {offsets = [0, 0], sizes = [16, 1], strides = [1, 1]} : vector<16x3xf32> to vector<16x1xf32>
    %82 = vector.extract_strided_slice %1 {offsets = [0, 1], sizes = [16, 1], strides = [1, 1]} : vector<16x3xf32> to vector<16x1xf32>
    %83 = vector.extract_strided_slice %1 {offsets = [0, 2], sizes = [16, 1], strides = [1, 1]} : vector<16x3xf32> to vector<16x1xf32>
    %84 = vector.broadcast %81 : vector<16x1xf32> to vector<16x138xf32>
    %85 = arith.addf %80, %84 : vector<16x138xf32>
    %cst_25 = arith.constant 0.000000e+00 : f32
    %86 = vector.broadcast %cst_25 : f32 to vector<16x138xf32>
    %87 = arith.maximumf %85, %86 : vector<16x138xf32>
    %88 = vector.broadcast %82 : vector<16x1xf32> to vector<16x138xf32>
    %89 = arith.mulf %87, %88 : vector<16x138xf32>
    %90 = vector.broadcast %83 : vector<16x1xf32> to vector<16x138xf32>
    %91 = arith.addf %89, %90 : vector<16x138xf32>
    %92 = vector.extract_strided_slice %91 {offsets = [0, 0], sizes = [16, 134], strides = [1, 1]} : vector<16x138xf32> to vector<16x134xf32>
    %93 = vector.extract_strided_slice %91 {offsets = [0, 1], sizes = [16, 134], strides = [1, 1]} : vector<16x138xf32> to vector<16x134xf32>
    %94 = vector.extract_strided_slice %91 {offsets = [0, 2], sizes = [16, 134], strides = [1, 1]} : vector<16x138xf32> to vector<16x134xf32>
    %95 = vector.extract_strided_slice %91 {offsets = [0, 3], sizes = [16, 134], strides = [1, 1]} : vector<16x138xf32> to vector<16x134xf32>
    %96 = vector.extract_strided_slice %91 {offsets = [0, 4], sizes = [16, 134], strides = [1, 1]} : vector<16x138xf32> to vector<16x134xf32>
    %97 = tpu.concatenate %92, %93, %94, %95, %96 in 0 : vector<16x134xf32>, vector<16x134xf32>, vector<16x134xf32>, vector<16x134xf32>, vector<16x134xf32> -> vector<80x134xf32>
    %cst_26 = arith.constant dense<0.000000e+00> : vector<32x134xf32>
    %98 = tpu.matmul %2, %97, %cst_26 {dimension_numbers = #tpu.dot_dimension_numbers<[1], [0], [0], [1], [0, 0, 1, 1], [], []>} : vector<32x80xf32>, vector<80x134xf32>, vector<32x134xf32> -> vector<32x134xf32>
    %99 = vector.extract_strided_slice %3 {offsets = [0, 0], sizes = [32, 1], strides = [1, 1]} : vector<32x3xf32> to vector<32x1xf32>
    %100 = vector.extract_strided_slice %3 {offsets = [0, 1], sizes = [32, 1], strides = [1, 1]} : vector<32x3xf32> to vector<32x1xf32>
    %101 = vector.extract_strided_slice %3 {offsets = [0, 2], sizes = [32, 1], strides = [1, 1]} : vector<32x3xf32> to vector<32x1xf32>
    %102 = vector.broadcast %99 : vector<32x1xf32> to vector<32x134xf32>
    %103 = arith.addf %98, %102 : vector<32x134xf32>
    %cst_27 = arith.constant 0.000000e+00 : f32
    %104 = vector.broadcast %cst_27 : f32 to vector<32x134xf32>
    %105 = arith.maximumf %103, %104 : vector<32x134xf32>
    %106 = vector.broadcast %100 : vector<32x1xf32> to vector<32x134xf32>
    %107 = arith.mulf %105, %106 : vector<32x134xf32>
    %108 = vector.broadcast %101 : vector<32x1xf32> to vector<32x134xf32>
    %109 = arith.addf %107, %108 : vector<32x134xf32>
    %110 = vector.extract_strided_slice %109 {offsets = [0, 0], sizes = [32, 128], strides = [1, 1]} : vector<32x134xf32> to vector<32x128xf32>
    %111 = vector.extract_strided_slice %109 {offsets = [0, 1], sizes = [32, 128], strides = [1, 1]} : vector<32x134xf32> to vector<32x128xf32>
    %112 = vector.extract_strided_slice %109 {offsets = [0, 2], sizes = [32, 128], strides = [1, 1]} : vector<32x134xf32> to vector<32x128xf32>
    %113 = vector.extract_strided_slice %109 {offsets = [0, 3], sizes = [32, 128], strides = [1, 1]} : vector<32x134xf32> to vector<32x128xf32>
    %114 = vector.extract_strided_slice %109 {offsets = [0, 4], sizes = [32, 128], strides = [1, 1]} : vector<32x134xf32> to vector<32x128xf32>
    %115 = vector.extract_strided_slice %109 {offsets = [0, 5], sizes = [32, 128], strides = [1, 1]} : vector<32x134xf32> to vector<32x128xf32>
    %116 = vector.extract_strided_slice %109 {offsets = [0, 6], sizes = [32, 128], strides = [1, 1]} : vector<32x134xf32> to vector<32x128xf32>
    %117 = tpu.concatenate %110, %111, %112, %113, %114, %115, %116 in 0 : vector<32x128xf32>, vector<32x128xf32>, vector<32x128xf32>, vector<32x128xf32>, vector<32x128xf32>, vector<32x128xf32>, vector<32x128xf32> -> vector<224x128xf32>
    %cst_28 = arith.constant dense<0.000000e+00> : vector<64x128xf32>
    %118 = tpu.matmul %4, %117, %cst_28 {dimension_numbers = #tpu.dot_dimension_numbers<[1], [0], [0], [1], [0, 0, 1, 1], [], []>} : vector<64x224xf32>, vector<224x128xf32>, vector<64x128xf32> -> vector<64x128xf32>
    %119 = vector.extract_strided_slice %5 {offsets = [0, 0], sizes = [64, 1], strides = [1, 1]} : vector<64x3xf32> to vector<64x1xf32>
    %120 = vector.extract_strided_slice %5 {offsets = [0, 1], sizes = [64, 1], strides = [1, 1]} : vector<64x3xf32> to vector<64x1xf32>
    %121 = vector.extract_strided_slice %5 {offsets = [0, 2], sizes = [64, 1], strides = [1, 1]} : vector<64x3xf32> to vector<64x1xf32>
    %122 = vector.broadcast %119 : vector<64x1xf32> to vector<64x128xf32>
    %123 = arith.addf %118, %122 : vector<64x128xf32>
    %cst_29 = arith.constant 0.000000e+00 : f32
    %124 = vector.broadcast %cst_29 : f32 to vector<64x128xf32>
    %125 = arith.maximumf %123, %124 : vector<64x128xf32>
    %126 = vector.broadcast %120 : vector<64x1xf32> to vector<64x128xf32>
    %127 = arith.mulf %125, %126 : vector<64x128xf32>
    %128 = vector.broadcast %121 : vector<64x1xf32> to vector<64x128xf32>
    %129 = arith.addf %127, %128 : vector<64x128xf32>
    %c1_30 = arith.constant 1 : index
    %c0_31 = arith.constant 0 : index
    %c0_32 = arith.constant 0 : index
    %130 = vector.load %arg8[%c1_30, %c0_31, %c0_32] : memref<2x64x128xf32, #tpu.memory_space<vmem>>, vector<1x64x128xf32>
    %131 = vector.shape_cast %130 : vector<1x64x128xf32> to vector<64x128xf32>
    %132 = vector.shape_cast %129 : vector<64x128xf32> to vector<1x64x128xf32>
    tpu.vector_store %arg8[%c1_30, %c0_31, %c0_32], %132 {strides = array<i32>} : memref<2x64x128xf32, #tpu.memory_space<vmem>>, vector<1x64x128xf32>,
    return
  }
  func.func @transform_0(%arg0: i32) -> (i32, i32, i32) {
    %c0_i32 = arith.constant 0 : i32
    %c0_i32_0 = arith.constant 0 : i32
    %c0_i32_1 = arith.constant 0 : i32
    return %arg0, %c0_i32, %c0_i32_0 : i32, i32, i32
  }
  func.func @transform_1(%arg0: i32) -> (i32, i32) {
    %c0_i32 = arith.constant 0 : i32
    %c0_i32_0 = arith.constant 0 : i32
    %c0_i32_1 = arith.constant 0 : i32
    return %c0_i32, %c0_i32_0 : i32, i32
  }
  func.func @transform_2(%arg0: i32) -> (i32, i32) {
    %c0_i32 = arith.constant 0 : i32
    %c0_i32_0 = arith.constant 0 : i32
    %c0_i32_1 = arith.constant 0 : i32
    return %c0_i32, %c0_i32_0 : i32, i32
  }
  func.func @transform_3(%arg0: i32) -> (i32, i32) {
    %c0_i32 = arith.constant 0 : i32
    %c0_i32_0 = arith.constant 0 : i32
    %c0_i32_1 = arith.constant 0 : i32
    return %c0_i32, %c0_i32_0 : i32, i32
  }
  func.func @transform_4(%arg0: i32) -> (i32, i32) {
    %c0_i32 = arith.constant 0 : i32
    %c0_i32_0 = arith.constant 0 : i32
    %c0_i32_1 = arith.constant 0 : i32
    return %c0_i32, %c0_i32_0 : i32, i32
  }
  func.func @transform_5(%arg0: i32) -> (i32, i32) {
    %c0_i32 = arith.constant 0 : i32
    %c0_i32_0 = arith.constant 0 : i32
    %c0_i32_1 = arith.constant 0 : i32
    return %c0_i32, %c0_i32_0 : i32, i32
  }
  func.func @transform_6(%arg0: i32) -> (i32, i32) {
    %c0_i32 = arith.constant 0 : i32
    %c0_i32_0 = arith.constant 0 : i32
    %c0_i32_1 = arith.constant 0 : i32
    return %c0_i32, %c0_i32_0 : i32, i32
  }
  func.func @transform_7(%arg0: i32) -> (i32, i32, i32) {
    %c0_i32 = arith.constant 0 : i32
    %c0_i32_0 = arith.constant 0 : i32
    %c0_i32_1 = arith.constant 0 : i32
    return %arg0, %c0_i32, %c0_i32_0 : i32, i32, i32
  }
}

</mosaic_0001>

<llo_original>
// kernel: tpu_custom_call.1
$region0: #{tpu_custom_call.1}
  #allocation0 [shape = 'u32[]', space=smem, size = 0x4, offset = 0x4, fixed_abs, tag = 'smem constant byte address 0x4 - core index']
  #allocation1 [shape = 'u32[72,128]{1,0:T(1,128)}', space=vmem, size = 0x9000, scoped, tag = 'internal scratch']
  %s0 = inlined_call_operand.vmem [shape: s32[2,1,140], index: 0, kind: input, shape index: {}]
  %s1 = inlined_call_operand.vmem [shape: f32[16,96], index: 1, kind: input, shape index: {}]
  %s2 = inlined_call_operand.vmem [shape: f32[16,3], index: 2, kind: input, shape index: {}]
  %s3 = inlined_call_operand.vmem [shape: f32[32,80], index: 3, kind: input, shape index: {}]
  %s4 = inlined_call_operand.vmem [shape: f32[32,3], index: 4, kind: input, shape index: {}]
  %s5 = inlined_call_operand.hbm [shape: f32[64,224], index: 5, kind: input, shape index: {}]
  %s6 = inlined_call_operand.vmem [shape: f32[64,3], index: 6, kind: input, shape index: {}]
  %s7 = inlined_call_operand.hbm [shape: f32[2,64,128], index: 7, kind: output, shape index: {}]
  %s8 = sld [smem:[#allocation0]]
  $region42: #{tpu_custom_call.1} parent=0
    _
  %s10 = ssub.s32 1, %s8
  %s11 = scalar_select 0, %s10, %s8
  $region1: #{tpu_custom_call.1} parent=0
    #allocation2 [shape = 'u8[65536]{0}', space=vmem, size = 0x10000, scoped, tag = 'input window, operand 5, single buffered']
    #allocation3 [shape = 's32[1]{0}', space=sflag, size = 0x4, scoped, tag = 'scoped memory for tpu_custom_call.1']
    #allocation4 [shape = 's32[1]{0}', space=sflag, size = 0x4, scoped, tag = 'scoped memory for tpu_custom_call.1']
    #allocation5 [shape = 'u8[65536]{0}', space=vmem, size = 0x10000, scoped, tag = 'output window, operand 0, single buffered']
    %12 = vsyncpa [#allocation3], 0
    %13 = vsyncpa [#allocation4], 0
    // Predicated region
    $region2: #{tpu_custom_call.1} parent=1 // pred_check
      _
    $region3: #{tpu_custom_call.1} parent=1 // pred_check_branch
      %15 = sbr.rel (0) target = $region5
    $region4: #{tpu_custom_call.1} parent=1 // pred_region
      _
    $region5: #{tpu_custom_call.1} parent=1 // pred_fallthru
      _
    // Predicated region
    $region6: #{tpu_custom_call.1} parent=1 // pred_check
      _
    $region7: #{tpu_custom_call.1} parent=1 // pred_check_branch
      %17 = sbr.rel (0) target = $region9
    $region8: #{tpu_custom_call.1} parent=1 // pred_region
      _
    $region9: #{tpu_custom_call.1} parent=1 // pred_fallthru
      _
    // Predicated region
    $region10: #{tpu_custom_call.1} parent=1 // pred_check
      _
    $region11: #{tpu_custom_call.1} parent=1 // pred_check_branch
      %19 = sbr.rel (0) target = $region13
    $region12: #{tpu_custom_call.1} parent=1 // pred_region
      _
    $region13: #{tpu_custom_call.1} parent=1 // pred_fallthru
      _
    // Predicated region
    $region14: #{tpu_custom_call.1} parent=1 // pred_check
      _
    $region15: #{tpu_custom_call.1} parent=1 // pred_check_branch
      %21 = sbr.rel (0) target = $region17
    $region16: #{tpu_custom_call.1} parent=1 // pred_region
      _
    $region17: #{tpu_custom_call.1} parent=1 // pred_fallthru
      _
    // Predicated region
    $region18: #{tpu_custom_call.1} parent=1 // pred_check
      _
    $region19: #{tpu_custom_call.1} parent=1 // pred_check_branch
      %23 = sbr.rel (0) target = $region21
    $region20: #{tpu_custom_call.1} parent=1 // pred_region
      _
    $region21: #{tpu_custom_call.1} parent=1 // pred_fallthru
      _
    // Predicated region
    $region22: #{tpu_custom_call.1} parent=1 // pred_check
      _
    $region23: #{tpu_custom_call.1} parent=1 // pred_check_branch
      %25 = sbr.rel (0) target = $region25
    $region24: #{tpu_custom_call.1} parent=1 // pred_region
      %27 = vsyncadd [#allocation3], 0
      %s28 = sshll.u32 %s5, 4
      %s29 = int_to_ptr.hbm [resolvable:$true] %s28
      %s30 = sshll.u32 [#allocation2], 4
      %s31 = int_to_ptr.vmem [resolvable:$true] %s30
      %36 = dma.hbm_to_vmem [thread:$0]  %s29, 2048, %s31, [#allocation3], 256, 256, 16
    $region25: #{tpu_custom_call.1} parent=1 // pred_fallthru
      _
    // Predicated region
    $region26: #{tpu_custom_call.1} parent=1 // pred_check
      _
    $region27: #{tpu_custom_call.1} parent=1 // pred_check_branch
      %38 = sbr.rel (0) target = $region29
    $region28: #{tpu_custom_call.1} parent=1 // pred_region
      _
    $region29: #{tpu_custom_call.1} parent=1 // pred_fallthru
      _
    // Predicated region
    $region30: #{tpu_custom_call.1} parent=1 // pred_check
      _
    $region31: #{tpu_custom_call.1} parent=1 // pred_check_branch
      %40 = sbr.rel (0) target = $region33
    $region32: #{tpu_custom_call.1} parent=1 // pred_region
      %42 = dma.done [#allocation3], 2048
    $region33: #{tpu_custom_call.1} parent=1 // pred_fallthru
      _
    %v43 = vld [vmem:[%s1] sm:$0xff]
    %v44 = vld [vmem:[%s1 + $0x8] sm:$0xff]
    %v45 = vld [vmem:[%s2] sm:$0xff]
    %v46 = vld [vmem:[%s2 + $0x8] sm:$0xff]
    %v47 = vld [vmem:[%s3] sm:$0xff]
    %v48 = vld [vmem:[%s3 + $0x8] sm:$0xff]
    %v49 = vld [vmem:[%s3 + $0x10] sm:$0xff]
    %v50 = vld [vmem:[%s3 + $0x18] sm:$0xff]
    %v51 = vld [vmem:[%s4] sm:$0xff]
    %v52 = vld [vmem:[%s4 + $0x8] sm:$0xff]
    %v53 = vld [vmem:[%s4 + $0x10] sm:$0xff]
    %v54 = vld [vmem:[%s4 + $0x18] sm:$0xff]
    %v55 = vld [vmem:[#allocation2] sm:$0xff]
    %v56 = vld [vmem:[#allocation2 + $0x8] sm:$0xff]
    %v57 = vld [vmem:[#allocation2 + $0x10] sm:$0xff]
    %v58 = vld [vmem:[#allocation2 + $0x18] sm:$0xff]
    %v59 = vld [vmem:[#allocation2 + $0x20] sm:$0xff]
    %v60 = vld [vmem:[#allocation2 + $0x28] sm:$0xff]
    %v61 = vld [vmem:[#allocation2 + $0x30] sm:$0xff]
    %v62 = vld [vmem:[#allocation2 + $0x38] sm:$0xff]
    %v63 = vld [vmem:[#allocation2 + $0x40] sm:$0xff]
    %v64 = vld [vmem:[#allocation2 + $0x48] sm:$0xff]
    %v65 = vld [vmem:[#allocation2 + $0x50] sm:$0xff]
    %v66 = vld [vmem:[#allocation2 + $0x58] sm:$0xff]
    %v67 = vld [vmem:[#allocation2 + $0x60] sm:$0xff]
    %v68 = vld [vmem:[#allocation2 + $0x68] sm:$0xff]
    %v69 = vld [vmem:[#allocation2 + $0x70] sm:$0xff]
    %v70 = vld [vmem:[#allocation2 + $0x78] sm:$0xff]
    %v71 = vld [vmem:[%s6] sm:$0xff]
    %v72 = vld [vmem:[%s6 + $0x8] sm:$0xff]
    %v73 = vld [vmem:[%s6 + $0x10] sm:$0xff]
    %v74 = vld [vmem:[%s6 + $0x18] sm:$0xff]
    %v75 = vld [vmem:[%s6 + $0x20] sm:$0xff]
    %v76 = vld [vmem:[%s6 + $0x28] sm:$0xff]
    %v77 = vld [vmem:[%s6 + $0x30] sm:$0xff]
    %v78 = vld [vmem:[%s6 + $0x38] sm:$0xff]
    %v79 = vlaneseq
    %v80 = vshrl.u32 %v79, 7
    %v81 = vadd.s32 %v80, 8
    %v82 = vadd.s32 %v80, 16
    %v83 = vadd.s32 %v80, 24
    %v84 = vld [vmem:[%s0] sm:$0x3]
    %v85 = vperm.slane %v84, 0
    %v86 = vperm.slane %v84, 1
    %vm87 = vcmp.eq.s32.totalorder %v80, %v85
    %vm88 = vcmp.eq.s32.totalorder %v80, %v86
    %vm89 = vcmp.eq.s32.totalorder %v81, %v85
    %vm90 = vcmp.eq.s32.totalorder %v81, %v86
    %vm91 = vcmp.eq.s32.totalorder %v82, %v85
    %vm92 = vcmp.eq.s32.totalorder %v82, %v86
    %vm93 = vcmp.eq.s32.totalorder %v83, %v85
    %vm94 = vcmp.eq.s32.totalorder %v83, %v86
    %v95 = vsel %vm87, 1, 0
    %v96 = vsel %vm88, 1, 0
    %v97 = vsel %vm89, 1, 0
    %v98 = vsel %vm90, 1, 0
    %v99 = vsel %vm91, 1, 0
    %v100 = vsel %vm92, 1, 0
    %v101 = vsel %vm93, 1, 0
    %v102 = vsel %vm94, 1, 0
    %v103 = vcvt.s32.f32 %v95
    %v104 = vcvt.s32.f32 %v96
    %v105 = vcvt.s32.f32 %v97
    %v106 = vcvt.s32.f32 %v98
    %v107 = vcvt.s32.f32 %v99
    %v108 = vcvt.s32.f32 %v100
    %v109 = vcvt.s32.f32 %v101
    %v110 = vcvt.s32.f32 %v102
    %119 = vrot.lane.b32.xlu0 %v103, 127
    %v120 = vpop.permute.xlu0 %119
    %121 = vrot.lane.b32.xlu0 %v104, 127
    %v122 = vpop.permute.xlu0 %121
    %123 = vrot.lane.b32.xlu0 %v105, 127
    %v124 = vpop.permute.xlu0 %123
    %125 = vrot.lane.b32.xlu0 %v106, 127
    %v126 = vpop.permute.xlu0 %125
    %127 = vrot.lane.b32.xlu0 %v107, 127
    %v128 = vpop.permute.xlu0 %127
    %129 = vrot.lane.b32.xlu0 %v108, 127
    %v130 = vpop.permute.xlu0 %129
    %131 = vrot.lane.b32.xlu0 %v109, 127
    %v132 = vpop.permute.xlu0 %131
    %133 = vrot.lane.b32.xlu0 %v110, 127
    %v134 = vpop.permute.xlu0 %133
    %vm135 = vcmask 1039360
    %v136 = vsel %vm135, %v120, %v122
    %v137 = vsel %vm135, %v124, %v126
    %v138 = vsel %vm135, %v128, %v130
    %v139 = vsel %vm135, %v132, %v134
    %148 = vrot.lane.b32.xlu0 %v103, 126
    %v149 = vpop.permute.xlu0 %148
    %150 = vrot.lane.b32.xlu0 %v104, 126
    %v151 = vpop.permute.xlu0 %150
    %152 = vrot.lane.b32.xlu0 %v105, 126
    %v153 = vpop.permute.xlu0 %152
    %154 = vrot.lane.b32.xlu0 %v106, 126
    %v155 = vpop.permute.xlu0 %154
    %156 = vrot.lane.b32.xlu0 %v107, 126
    %v157 = vpop.permute.xlu0 %156
    %158 = vrot.lane.b32.xlu0 %v108, 126
    %v159 = vpop.permute.xlu0 %158
    %160 = vrot.lane.b32.xlu0 %v109, 126
    %v161 = vpop.permute.xlu0 %160
    %162 = vrot.lane.b32.xlu0 %v110, 126
    %v163 = vpop.permute.xlu0 %162
    %vm164 = vcmask 1031168
    %v165 = vsel %vm164, %v149, %v151
    %v166 = vsel %vm164, %v153, %v155
    %v167 = vsel %vm164, %v157, %v159
    %v168 = vsel %vm164, %v161, %v163
    %178 = vset.pattern.permute.xlu0 0
    %179 = vperm.xlu0 %178, %v45
    %v180 = vpop.permute.xlu0 %179
    %183 = vset.pattern.permute.xlu0 0
    %184 = vperm.xlu0 %183, %v46
    %v185 = vpop.permute.xlu0 %184
    %vm187 = vcmask 785408
    %v189 = vsel %vm187, %v43, 0
    %v192 = vsel %vm187, %v44, 0
    %194 = vmatpush.msra.mxu0 0.0
    %195 = vmatpush.msra.mxu0 0.0
    %196 = vmatpush.msra.mxu0 0.0
    %197 = vmatpush.msra.mxu0 0.0
    %198 = vmatpush.msra.mxu0 %v168
    %199 = vmatpush.msra.mxu0 %v167
    %200 = vmatpush.msra.mxu0 %v166
    %201 = vmatpush.msra.mxu0 %v165
    %202 = vmatpush.msra.mxu0 %v139
    %203 = vmatpush.msra.mxu0 %v138
    %204 = vmatpush.msra.mxu0 %v137
    %205 = vmatpush.msra.mxu0 %v136
    %206 = vmatpush.msra.mxu0 %v109
    %207 = vmatpush.msra.mxu0 %v107
    %208 = vmatpush.msra.mxu0 %v105
    %209 = vmatpush.msra.mxu0 %v103
    %210 = vmatmul.f32.gmra.mxu0 %v189
    %v211 = vpop.f32.mrf.mxu0
    %v212 = vadd.f32 %v180, %v211
    %213 = vmatmul.f32.gmra.mxu0 %v192
    %v214 = vpop.f32.mrf.mxu0
    %v215 = vadd.f32 %v185, %v214
    %216 = vdwg.mxu0
    %217 = vmatpush.msra.mxu0 0.0
    %218 = vmatpush.msra.mxu0 0.0
    %219 = vmatpush.msra.mxu0 0.0
    %220 = vmatpush.msra.mxu0 0.0
    %221 = vmatpush.msra.mxu0 %v163
    %222 = vmatpush.msra.mxu0 %v159
    %223 = vmatpush.msra.mxu0 %v155
    %224 = vmatpush.msra.mxu0 %v151
    %225 = vmatpush.msra.mxu0 %v134
    %226 = vmatpush.msra.mxu0 %v130
    %227 = vmatpush.msra.mxu0 %v126
    %228 = vmatpush.msra.mxu0 %v122
    %229 = vmatpush.msra.mxu0 %v110
    %230 = vmatpush.msra.mxu0 %v108
    %231 = vmatpush.msra.mxu0 %v106
    %232 = vmatpush.msra.mxu0 %v104
    %233 = vmatmul.f32.gmra.mxu0 %v189
    %v234 = vpop.f32.mrf.mxu0
    %v235 = vadd.f32 %v180, %v234
    %236 = vmatmul.f32.gmra.mxu0 %v192
    %v237 = vpop.f32.mrf.mxu0
    %v238 = vadd.f32 %v185, %v237
    %239 = vdwg.mxu0
    %v240 = vmax.f32 %v212, 0.0
    %v241 = vmax.f32 %v235, 0.0
    %v242 = vmax.f32 %v215, 0.0
    %v243 = vmax.f32 %v238, 0.0
    %244 = vset.pattern.permute.xlu0 1
    %245 = vperm.xlu0 %244, %v45
    %v246 = vpop.permute.xlu0 %245
    %248 = vset.pattern.permute.xlu0 1
    %249 = vperm.xlu0 %248, %v46
    %v250 = vpop.permute.xlu0 %249
    %v252 = vmul.f32 %v240, %v246
    %v253 = vmul.f32 %v241, %v246
    %v254 = vmul.f32 %v242, %v250
    %v255 = vmul.f32 %v243, %v250
    %256 = vset.pattern.permute.xlu0 2
    %257 = vperm.xlu0 %256, %v45
    %v258 = vpop.permute.xlu0 %257
    %260 = vset.pattern.permute.xlu0 2
    %261 = vperm.xlu0 %260, %v46
    %v262 = vpop.permute.xlu0 %261
    %v264 = vadd.f32 %v252, %v258
    %v265 = vadd.f32 %v253, %v258
    %v266 = vadd.f32 %v254, %v262
    %v267 = vadd.f32 %v255, %v262
    %272 = vrot.lane.b32.xlu0 %v264, 127
    %v273 = vpop.permute.xlu0 %272
    %274 = vrot.lane.b32.xlu0 %v265, 127
    %v275 = vpop.permute.xlu0 %274
    %276 = vrot.lane.b32.xlu0 %v266, 127
    %v277 = vpop.permute.xlu0 %276
    %278 = vrot.lane.b32.xlu0 %v267, 127
    %v279 = vpop.permute.xlu0 %278
    %v280 = vsel %vm135, %v273, %v275
    %v281 = vsel %vm135, %v277, %v279
    %286 = vrot.lane.b32.xlu0 %v264, 126
    %v287 = vpop.permute.xlu0 %286
    %288 = vrot.lane.b32.xlu0 %v265, 126
    %v289 = vpop.permute.xlu0 %288
    %290 = vrot.lane.b32.xlu0 %v266, 126
    %v291 = vpop.permute.xlu0 %290
    %292 = vrot.lane.b32.xlu0 %v267, 126
    %v293 = vpop.permute.xlu0 %292
    %v294 = vsel %vm164, %v287, %v289
    %v295 = vsel %vm164, %v291, %v293
    %300 = vrot.lane.b32.xlu0 %v264, 125
    %v301 = vpop.permute.xlu0 %300
    %302 = vrot.lane.b32.xlu0 %v265, 125
    %v303 = vpop.permute.xlu0 %302
    %304 = vrot.lane.b32.xlu0 %v266, 125
    %v305 = vpop.permute.xlu0 %304
    %306 = vrot.lane.b32.xlu0 %v267, 125
    %v307 = vpop.permute.xlu0 %306
    %vm308 = vcmask 1022976
    %v309 = vsel %vm308, %v301, %v303
    %v310 = vsel %vm308, %v305, %v307
    %315 = vrot.lane.b32.xlu0 %v264, 124
    %v316 = vpop.permute.xlu0 %315
    %317 = vrot.lane.b32.xlu0 %v265, 124
    %v318 = vpop.permute.xlu0 %317
    %319 = vrot.lane.b32.xlu0 %v266, 124
    %v320 = vpop.permute.xlu0 %319
    %321 = vrot.lane.b32.xlu0 %v267, 124
    %v322 = vpop.permute.xlu0 %321
    %vm323 = vcmask 1014784
    %v324 = vsel %vm323, %v316, %v318
    %v325 = vsel %vm323, %v320, %v322
    %331 = vset.pattern.permute.xlu0 0
    %332 = vperm.xlu0 %331, %v51
    %v333 = vpop.permute.xlu0 %332
    %336 = vset.pattern.permute.xlu0 0
    %337 = vperm.xlu0 %336, %v52
    %v338 = vpop.permute.xlu0 %337
    %341 = vset.pattern.permute.xlu0 0
    %342 = vperm.xlu0 %341, %v53
    %v343 = vpop.permute.xlu0 %342
    %346 = vset.pattern.permute.xlu0 0
    %347 = vperm.xlu0 %346, %v54
    %v348 = vpop.permute.xlu0 %347
    %vm350 = vcmask 654336
    %v352 = vsel %vm350, %v47, 0
    %v355 = vsel %vm350, %v48, 0
    %v358 = vsel %vm350, %v49, 0
    %v361 = vsel %vm350, %v50, 0
    %363 = vmatpush.msra.mxu0 0.0
    %364 = vmatpush.msra.mxu0 0.0
    %365 = vmatpush.msra.mxu0 0.0
    %366 = vmatpush.msra.mxu0 0.0
    %367 = vmatpush.msra.mxu0 0.0
    %368 = vmatpush.msra.mxu0 0.0
    %369 = vmatpush.msra.mxu0 %v325
    %370 = vmatpush.msra.mxu0 %v324
    %371 = vmatpush.msra.mxu0 %v310
    %372 = vmatpush.msra.mxu0 %v309
    %373 = vmatpush.msra.mxu0 %v295
    %374 = vmatpush.msra.mxu0 %v294
    %375 = vmatpush.msra.mxu0 %v281
    %376 = vmatpush.msra.mxu0 %v280
    %377 = vmatpush.msra.mxu0 %v266
    %378 = vmatpush.msra.mxu0 %v264
    %379 = vmatmul.f32.gmra.mxu0 %v352
    %v380 = vpop.f32.mrf.mxu0
    %v381 = vadd.f32 %v333, %v380
    %382 = vmatmul.f32.gmra.mxu0 %v355
    %v383 = vpop.f32.mrf.mxu0
    %v384 = vadd.f32 %v338, %v383
    %385 = vmatmul.f32.gmra.mxu0 %v358
    %v386 = vpop.f32.mrf.mxu0
    %v387 = vadd.f32 %v343, %v386
    %388 = vmatmul.f32.gmra.mxu0 %v361
    %v389 = vpop.f32.mrf.mxu0
    %v390 = vadd.f32 %v348, %v389
    %391 = vdwg.mxu0
    %392 = vmatpush.msra.mxu0 0.0
    %393 = vmatpush.msra.mxu0 0.0
    %394 = vmatpush.msra.mxu0 0.0
    %395 = vmatpush.msra.mxu0 0.0
    %396 = vmatpush.msra.mxu0 0.0
    %397 = vmatpush.msra.mxu0 0.0
    %398 = vmatpush.msra.mxu0 %v322
    %399 = vmatpush.msra.mxu0 %v318
    %400 = vmatpush.msra.mxu0 %v307
    %401 = vmatpush.msra.mxu0 %v303
    %402 = vmatpush.msra.mxu0 %v293
    %403 = vmatpush.msra.mxu0 %v289
    %404 = vmatpush.msra.mxu0 %v279
    %405 = vmatpush.msra.mxu0 %v275
    %406 = vmatpush.msra.mxu0 %v267
    %407 = vmatpush.msra.mxu0 %v265
    %408 = vmatmul.f32.gmra.mxu0 %v352
    %v409 = vpop.f32.mrf.mxu0
    %v410 = vadd.f32 %v333, %v409
    %411 = vmatmul.f32.gmra.mxu0 %v355
    %v412 = vpop.f32.mrf.mxu0
    %v413 = vadd.f32 %v338, %v412
    %414 = vmatmul.f32.gmra.mxu0 %v358
    %v415 = vpop.f32.mrf.mxu0
    %v416 = vadd.f32 %v343, %v415
    %417 = vmatmul.f32.gmra.mxu0 %v361
    %v418 = vpop.f32.mrf.mxu0
    %v419 = vadd.f32 %v348, %v418
    %420 = vdwg.mxu0
    %v421 = vmax.f32 %v381, 0.0
    %v422 = vmax.f32 %v410, 0.0
    %v423 = vmax.f32 %v384, 0.0
    %v424 = vmax.f32 %v413, 0.0
    %v425 = vmax.f32 %v387, 0.0
    %v426 = vmax.f32 %v416, 0.0
    %v427 = vmax.f32 %v390, 0.0
    %v428 = vmax.f32 %v419, 0.0
    %429 = vset.pattern.permute.xlu0 1
    %430 = vperm.xlu0 %429, %v51
    %v431 = vpop.permute.xlu0 %430
    %433 = vset.pattern.permute.xlu0 1
    %434 = vperm.xlu0 %433, %v52
    %v435 = vpop.permute.xlu0 %434
    %437 = vset.pattern.permute.xlu0 1
    %438 = vperm.xlu0 %437, %v53
    %v439 = vpop.permute.xlu0 %438
    %441 = vset.pattern.permute.xlu0 1
    %442 = vperm.xlu0 %441, %v54
    %v443 = vpop.permute.xlu0 %442
    %v445 = vmul.f32 %v421, %v431
    %v446 = vmul.f32 %v422, %v431
    %v447 = vmul.f32 %v423, %v435
    %v448 = vmul.f32 %v424, %v435
    %v449 = vmul.f32 %v425, %v439
    %v450 = vmul.f32 %v426, %v439
    %v451 = vmul.f32 %v427, %v443
    %v452 = vmul.f32 %v428, %v443
    %453 = vset.pattern.permute.xlu0 2
    %454 = vperm.xlu0 %453, %v51
    %v455 = vpop.permute.xlu0 %454
    %457 = vset.pattern.permute.xlu0 2
    %458 = vperm.xlu0 %457, %v52
    %v459 = vpop.permute.xlu0 %458
    %461 = vset.pattern.permute.xlu0 2
    %462 = vperm.xlu0 %461, %v53
    %v463 = vpop.permute.xlu0 %462
    %465 = vset.pattern.permute.xlu0 2
    %466 = vperm.xlu0 %465, %v54
    %v467 = vpop.permute.xlu0 %466
    %v469 = vadd.f32 %v445, %v455
    %v470 = vadd.f32 %v446, %v455
    %v471 = vadd.f32 %v447, %v459
    %v472 = vadd.f32 %v448, %v459
    %v473 = vadd.f32 %v449, %v463
    %v474 = vadd.f32 %v450, %v463
    %v475 = vadd.f32 %v451, %v467
    %v476 = vadd.f32 %v452, %v467
    %485 = vrot.lane.b32.xlu0 %v469, 127
    %v486 = vpop.permute.xlu0 %485
    %487 = vrot.lane.b32.xlu0 %v470, 127
    %v488 = vpop.permute.xlu0 %487
    %489 = vrot.lane.b32.xlu0 %v471, 127
    %v490 = vpop.permute.xlu0 %489
    %491 = vrot.lane.b32.xlu0 %v472, 127
    %v492 = vpop.permute.xlu0 %491
    %493 = vrot.lane.b32.xlu0 %v473, 127
    %v494 = vpop.permute.xlu0 %493
    %495 = vrot.lane.b32.xlu0 %v474, 127
    %v496 = vpop.permute.xlu0 %495
    %497 = vrot.lane.b32.xlu0 %v475, 127
    %v498 = vpop.permute.xlu0 %497
    %499 = vrot.lane.b32.xlu0 %v476, 127
    %v500 = vpop.permute.xlu0 %499
    %v501 = vsel %vm135, %v486, %v488
    %v502 = vsel %vm135, %v490, %v492
    %v503 = vsel %vm135, %v494, %v496
    %v504 = vsel %vm135, %v498, %v500
    %509 = vrot.lane.b32.xlu0 %v469, 126
    %v510 = vpop.permute.xlu0 %509
    %511 = vrot.lane.b32.xlu0 %v470, 126
    %v512 = vpop.permute.xlu0 %511
    %513 = vrot.lane.b32.xlu0 %v471, 126
    %v514 = vpop.permute.xlu0 %513
    %515 = vrot.lane.b32.xlu0 %v472, 126
    %v516 = vpop.permute.xlu0 %515
    %517 = vrot.lane.b32.xlu0 %v473, 126
    %v518 = vpop.permute.xlu0 %517
    %519 = vrot.lane.b32.xlu0 %v474, 126
    %v520 = vpop.permute.xlu0 %519
    %521 = vrot.lane.b32.xlu0 %v475, 126
    %v522 = vpop.permute.xlu0 %521
    %523 = vrot.lane.b32.xlu0 %v476, 126
    %v524 = vpop.permute.xlu0 %523
    %v525 = vsel %vm164, %v510, %v512
    %v526 = vsel %vm164, %v514, %v516
    %v527 = vsel %vm164, %v518, %v520
    %v528 = vsel %vm164, %v522, %v524
    %533 = vrot.lane.b32.xlu0 %v469, 125
    %v534 = vpop.permute.xlu0 %533
    %535 = vrot.lane.b32.xlu0 %v470, 125
    %v536 = vpop.permute.xlu0 %535
    %537 = vrot.lane.b32.xlu0 %v471, 125
    %v538 = vpop.permute.xlu0 %537
    %539 = vrot.lane.b32.xlu0 %v472, 125
    %v540 = vpop.permute.xlu0 %539
    %541 = vrot.lane.b32.xlu0 %v473, 125
    %v542 = vpop.permute.xlu0 %541
    %543 = vrot.lane.b32.xlu0 %v474, 125
    %v544 = vpop.permute.xlu0 %543
    %545 = vrot.lane.b32.xlu0 %v475, 125
    %v546 = vpop.permute.xlu0 %545
    %547 = vrot.lane.b32.xlu0 %v476, 125
    %v548 = vpop.permute.xlu0 %547
    %v549 = vsel %vm308, %v534, %v536
    %v550 = vsel %vm308, %v538, %v540
    %v551 = vsel %vm308, %v542, %v544
    %v552 = vsel %vm308, %v546, %v548
    %557 = vrot.lane.b32.xlu0 %v469, 124
    %v558 = vpop.permute.xlu0 %557
    %559 = vrot.lane.b32.xlu0 %v470, 124
    %v560 = vpop.permute.xlu0 %559
    %561 = vrot.lane.b32.xlu0 %v471, 124
    %v562 = vpop.permute.xlu0 %561
    %563 = vrot.lane.b32.xlu0 %v472, 124
    %v564 = vpop.permute.xlu0 %563
    %565 = vrot.lane.b32.xlu0 %v473, 124
    %v566 = vpop.permute.xlu0 %565
    %567 = vrot.lane.b32.xlu0 %v474, 124
    %v568 = vpop.permute.xlu0 %567
    %569 = vrot.lane.b32.xlu0 %v475, 124
    %v570 = vpop.permute.xlu0 %569
    %571 = vrot.lane.b32.xlu0 %v476, 124
    %v572 = vpop.permute.xlu0 %571
    %v573 = vsel %vm323, %v558, %v560
    %v574 = vsel %vm323, %v562, %v564
    %v575 = vsel %vm323, %v566, %v568
    %v576 = vsel %vm323, %v570, %v572
    %581 = vrot.lane.b32.xlu0 %v469, 123
    %v582 = vpop.permute.xlu0 %581
    %583 = vrot.lane.b32.xlu0 %v470, 123
    %v584 = vpop.permute.xlu0 %583
    %585 = vrot.lane.b32.xlu0 %v471, 123
    %v586 = vpop.permute.xlu0 %585
    %587 = vrot.lane.b32.xlu0 %v472, 123
    %v588 = vpop.permute.xlu0 %587
    %589 = vrot.lane.b32.xlu0 %v473, 123
    %v590 = vpop.permute.xlu0 %589
    %591 = vrot.lane.b32.xlu0 %v474, 123
    %v592 = vpop.permute.xlu0 %591
    %593 = vrot.lane.b32.xlu0 %v475, 123
    %v594 = vpop.permute.xlu0 %593
    %595 = vrot.lane.b32.xlu0 %v476, 123
    %v596 = vpop.permute.xlu0 %595
    %vm597 = vcmask 1006592
    %v598 = vsel %vm597, %v582, %v584
    %v599 = vsel %vm597, %v586, %v588
    %v600 = vsel %vm597, %v590, %v592
    %v601 = vsel %vm597, %v594, %v596
    %606 = vrot.lane.b32.xlu0 %v469, 122
    %v607 = vpop.permute.xlu0 %606
    %608 = vrot.lane.b32.xlu0 %v470, 122
    %v609 = vpop.permute.xlu0 %608
    %610 = vrot.lane.b32.xlu0 %v471, 122
    %v611 = vpop.permute.xlu0 %610
    %612 = vrot.lane.b32.xlu0 %v472, 122
    %v613 = vpop.permute.xlu0 %612
    %614 = vrot.lane.b32.xlu0 %v473, 122
    %v615 = vpop.permute.xlu0 %614
    %616 = vrot.lane.b32.xlu0 %v474, 122
    %v617 = vpop.permute.xlu0 %616
    %618 = vrot.lane.b32.xlu0 %v475, 122
    %v619 = vpop.permute.xlu0 %618
    %620 = vrot.lane.b32.xlu0 %v476, 122
    %v621 = vpop.permute.xlu0 %620
    %vm622 = vcmask 998400
    %v623 = vsel %vm622, %v607, %v609
    %v624 = vsel %vm622, %v611, %v613
    %v625 = vsel %vm622, %v615, %v617
    %v626 = vsel %vm622, %v619, %v621
    %632 = vset.pattern.permute.xlu0 0
    %633 = vperm.xlu0 %632, %v71
    %v634 = vpop.permute.xlu0 %633
    %637 = vset.pattern.permute.xlu0 0
    %638 = vperm.xlu0 %637, %v72
    %v639 = vpop.permute.xlu0 %638
    %642 = vset.pattern.permute.xlu0 0
    %643 = vperm.xlu0 %642, %v73
    %v644 = vpop.permute.xlu0 %643
    %647 = vset.pattern.permute.xlu0 0
    %648 = vperm.xlu0 %647, %v74
    %v649 = vpop.permute.xlu0 %648
    %652 = vset.pattern.permute.xlu0 0
    %653 = vperm.xlu0 %652, %v75
    %v654 = vpop.permute.xlu0 %653
    %657 = vset.pattern.permute.xlu0 0
    %658 = vperm.xlu0 %657, %v76
    %v659 = vpop.permute.xlu0 %658
    %662 = vset.pattern.permute.xlu0 0
    %663 = vperm.xlu0 %662, %v77
    %v664 = vpop.permute.xlu0 %663
    %667 = vset.pattern.permute.xlu0 0
    %668 = vperm.xlu0 %667, %v78
    %v669 = vpop.permute.xlu0 %668
    %v672 = vsel %vm187, %v56, 0
    %v675 = vsel %vm187, %v58, 0
    %v678 = vsel %vm187, %v60, 0
    %v681 = vsel %vm187, %v62, 0
    %v684 = vsel %vm187, %v64, 0
    %v687 = vsel %vm187, %v66, 0
    %v690 = vsel %vm187, %v68, 0
    %v693 = vsel %vm187, %v70, 0
    %695 = vmatpush.msra.mxu0 %v552
    %696 = vmatpush.msra.mxu0 %v551
    %697 = vmatpush.msra.mxu0 %v550
    %698 = vmatpush.msra.mxu0 %v549
    %699 = vmatpush.msra.mxu0 %v528
    %700 = vmatpush.msra.mxu0 %v527
    %701 = vmatpush.msra.mxu0 %v526
    %702 = vmatpush.msra.mxu0 %v525
    %703 = vmatpush.msra.mxu0 %v504
    %704 = vmatpush.msra.mxu0 %v503
    %705 = vmatpush.msra.mxu0 %v502
    %706 = vmatpush.msra.mxu0 %v501
    %707 = vmatpush.msra.mxu0 %v475
    %708 = vmatpush.msra.mxu0 %v473
    %709 = vmatpush.msra.mxu0 %v471
    %710 = vmatpush.msra.mxu0 %v469
    %711 = vmatmul.f32.gmra.mxu0 %v55
    %v712 = vpop.f32.mrf.mxu0
    %v713 = vadd.f32 %v634, %v712
    %714 = vmatmul.f32.gmra.mxu0 %v57
    %v715 = vpop.f32.mrf.mxu0
    %v716 = vadd.f32 %v639, %v715
    %717 = vmatmul.f32.gmra.mxu0 %v59
    %v718 = vpop.f32.mrf.mxu0
    %v719 = vadd.f32 %v644, %v718
    %720 = vmatmul.f32.gmra.mxu0 %v61
    %v721 = vpop.f32.mrf.mxu0
    %v722 = vadd.f32 %v649, %v721
    %723 = vmatmul.f32.gmra.mxu0 %v63
    %v724 = vpop.f32.mrf.mxu0
    %v725 = vadd.f32 %v654, %v724
    %726 = vmatmul.f32.gmra.mxu0 %v65
    %v727 = vpop.f32.mrf.mxu0
    %v728 = vadd.f32 %v659, %v727
    %729 = vmatmul.f32.gmra.mxu0 %v67
    %v730 = vpop.f32.mrf.mxu0
    %v731 = vadd.f32 %v664, %v730
    %732 = vmatmul.f32.gmra.mxu0 %v69
    %v733 = vpop.f32.mrf.mxu0
    %v734 = vadd.f32 %v669, %v733
    %735 = vdwg.mxu0
    %736 = vmatpush.msra.mxu0 0.0
    %737 = vmatpush.msra.mxu0 0.0
    %738 = vmatpush.msra.mxu0 0.0
    %739 = vmatpush.msra.mxu0 0.0
    %740 = vmatpush.msra.mxu0 %v626
    %741 = vmatpush.msra.mxu0 %v625
    %742 = vmatpush.msra.mxu0 %v624
    %743 = vmatpush.msra.mxu0 %v623
    %744 = vmatpush.msra.mxu0 %v601
    %745 = vmatpush.msra.mxu0 %v600
    %746 = vmatpush.msra.mxu0 %v599
    %747 = vmatpush.msra.mxu0 %v598
    %748 = vmatpush.msra.mxu0 %v576
    %749 = vmatpush.msra.mxu0 %v575
    %750 = vmatpush.msra.mxu0 %v574
    %751 = vmatpush.msra.mxu0 %v573
    %752 = vmatmul.f32.gmra.mxu0 %v672
    %v753 = vpop.f32.mrf.mxu0
    %v754 = vadd.f32 %v713, %v753
    %755 = vmatmul.f32.gmra.mxu0 %v675
    %v756 = vpop.f32.mrf.mxu0
    %v757 = vadd.f32 %v716, %v756
    %758 = vmatmul.f32.gmra.mxu0 %v678
    %v759 = vpop.f32.mrf.mxu0
    %v760 = vadd.f32 %v719, %v759
    %761 = vmatmul.f32.gmra.mxu0 %v681
    %v762 = vpop.f32.mrf.mxu0
    %v763 = vadd.f32 %v722, %v762
    %764 = vmatmul.f32.gmra.mxu0 %v684
    %v765 = vpop.f32.mrf.mxu0
    %v766 = vadd.f32 %v725, %v765
    %767 = vmatmul.f32.gmra.mxu0 %v687
    %v768 = vpop.f32.mrf.mxu0
    %v769 = vadd.f32 %v728, %v768
    %770 = vmatmul.f32.gmra.mxu0 %v690
    %v771 = vpop.f32.mrf.mxu0
    %v772 = vadd.f32 %v731, %v771
    %773 = vmatmul.f32.gmra.mxu0 %v693
    %v774 = vpop.f32.mrf.mxu0
    %v775 = vadd.f32 %v734, %v774
    %776 = vdwg.mxu0
    %v777 = vmax.f32 %v754, 0.0
    %v778 = vmax.f32 %v757, 0.0
    %v779 = vmax.f32 %v760, 0.0
    %v780 = vmax.f32 %v763, 0.0
    %v781 = vmax.f32 %v766, 0.0
    %v782 = vmax.f32 %v769, 0.0
    %v783 = vmax.f32 %v772, 0.0
    %v784 = vmax.f32 %v775, 0.0
    %785 = vset.pattern.permute.xlu0 1
    %786 = vperm.xlu0 %785, %v71
    %v787 = vpop.permute.xlu0 %786
    %789 = vset.pattern.permute.xlu0 1
    %790 = vperm.xlu0 %789, %v72
    %v791 = vpop.permute.xlu0 %790
    %793 = vset.pattern.permute.xlu0 1
    %794 = vperm.xlu0 %793, %v73
    %v795 = vpop.permute.xlu0 %794
    %797 = vset.pattern.permute.xlu0 1
    %798 = vperm.xlu0 %797, %v74
    %v799 = vpop.permute.xlu0 %798
    %801 = vset.pattern.permute.xlu0 1
    %802 = vperm.xlu0 %801, %v75
    %v803 = vpop.permute.xlu0 %802
    %805 = vset.pattern.permute.xlu0 1
    %806 = vperm.xlu0 %805, %v76
    %v807 = vpop.permute.xlu0 %806
    %809 = vset.pattern.permute.xlu0 1
    %810 = vperm.xlu0 %809, %v77
    %v811 = vpop.permute.xlu0 %810
    %813 = vset.pattern.permute.xlu0 1
    %814 = vperm.xlu0 %813, %v78
    %v815 = vpop.permute.xlu0 %814
    %v817 = vmul.f32 %v777, %v787
    %v818 = vmul.f32 %v778, %v791
    %v819 = vmul.f32 %v779, %v795
    %v820 = vmul.f32 %v780, %v799
    %v821 = vmul.f32 %v781, %v803
    %v822 = vmul.f32 %v782, %v807
    %v823 = vmul.f32 %v783, %v811
    %v824 = vmul.f32 %v784, %v815
    %825 = vset.pattern.permute.xlu0 2
    %826 = vperm.xlu0 %825, %v71
    %v827 = vpop.permute.xlu0 %826
    %829 = vset.pattern.permute.xlu0 2
    %830 = vperm.xlu0 %829, %v72
    %v831 = vpop.permute.xlu0 %830
    %833 = vset.pattern.permute.xlu0 2
    %834 = vperm.xlu0 %833, %v73
    %v835 = vpop.permute.xlu0 %834
    %837 = vset.pattern.permute.xlu0 2
    %838 = vperm.xlu0 %837, %v74
    %v839 = vpop.permute.xlu0 %838
    %841 = vset.pattern.permute.xlu0 2
    %842 = vperm.xlu0 %841, %v75
    %v843 = vpop.permute.xlu0 %842
    %845 = vset.pattern.permute.xlu0 2
    %846 = vperm.xlu0 %845, %v76
    %v847 = vpop.permute.xlu0 %846
    %849 = vset.pattern.permute.xlu0 2
    %850 = vperm.xlu0 %849, %v77
    %v851 = vpop.permute.xlu0 %850
    %853 = vset.pattern.permute.xlu0 2
    %854 = vperm.xlu0 %853, %v78
    %v855 = vpop.permute.xlu0 %854
    %v857 = vadd.f32 %v817, %v827
    %v858 = vadd.f32 %v818, %v831
    %v859 = vadd.f32 %v819, %v835
    %v860 = vadd.f32 %v820, %v839
    %v861 = vadd.f32 %v821, %v843
    %v862 = vadd.f32 %v822, %v847
    %v863 = vadd.f32 %v823, %v851
    %v864 = vadd.f32 %v824, %v855
    %865 = vst [vmem:[#allocation5] sm:$0xff] %v857
    %866 = vst [vmem:[#allocation5 + $0x8] sm:$0xff] %v858
    %867 = vst [vmem:[#allocation5 + $0x10] sm:$0xff] %v859
    %868 = vst [vmem:[#allocation5 + $0x18] sm:$0xff] %v860
    %869 = vst [vmem:[#allocation5 + $0x20] sm:$0xff] %v861
    %870 = vst [vmem:[#allocation5 + $0x28] sm:$0xff] %v862
    %871 = vst [vmem:[#allocation5 + $0x30] sm:$0xff] %v863
    %872 = vst [vmem:[#allocation5 + $0x38] sm:$0xff] %v864
    %s873 = scalar_lea.vmem %s0, 2
    %v874 = vld [vmem:[%s873] sm:$0x3]
    %v875 = vperm.slane %v874, 0
    %v876 = vperm.slane %v874, 1
    %vm877 = vcmp.eq.s32.totalorder %v80, %v875
    %vm878 = vcmp.eq.s32.totalorder %v80, %v876
    %vm879 = vcmp.eq.s32.totalorder %v81, %v875
    %vm880 = vcmp.eq.s32.totalorder %v81, %v876
    %vm881 = vcmp.eq.s32.totalorder %v82, %v875
    %vm882 = vcmp.eq.s32.totalorder %v82, %v876
    %vm883 = vcmp.eq.s32.totalorder %v83, %v875
    %vm884 = vcmp.eq.s32.totalorder %v83, %v876
    %v885 = vsel %vm877, 1, 0
    %v886 = vsel %vm878, 1, 0
    %v887 = vsel %vm879, 1, 0
    %v888 = vsel %vm880, 1, 0
    %v889 = vsel %vm881, 1, 0
    %v890 = vsel %vm882, 1, 0
    %v891 = vsel %vm883, 1, 0
    %v892 = vsel %vm884, 1, 0
    %v893 = vcvt.s32.f32 %v885
    %v894 = vcvt.s32.f32 %v886
    %v895 = vcvt.s32.f32 %v887
    %v896 = vcvt.s32.f32 %v888
    %v897 = vcvt.s32.f32 %v889
    %v898 = vcvt.s32.f32 %v890
    %v899 = vcvt.s32.f32 %v891
    %v900 = vcvt.s32.f32 %v892
    %909 = vrot.lane.b32.xlu0 %v893, 127
    %v910 = vpop.permute.xlu0 %909
    %911 = vrot.lane.b32.xlu0 %v894, 127
    %v912 = vpop.permute.xlu0 %911
    %913 = vrot.lane.b32.xlu0 %v895, 127
    %v914 = vpop.permute.xlu0 %913
    %915 = vrot.lane.b32.xlu0 %v896, 127
    %v916 = vpop.permute.xlu0 %915
    %917 = vrot.lane.b32.xlu0 %v897, 127
    %v918 = vpop.permute.xlu0 %917
    %919 = vrot.lane.b32.xlu0 %v898, 127
    %v920 = vpop.permute.xlu0 %919
    %921 = vrot.lane.b32.xlu0 %v899, 127
    %v922 = vpop.permute.xlu0 %921
    %923 = vrot.lane.b32.xlu0 %v900, 127
    %v924 = vpop.permute.xlu0 %923
    %v925 = vsel %vm135, %v910, %v912
    %v926 = vsel %vm135, %v914, %v916
    %v927 = vsel %vm135, %v918, %v920
    %v928 = vsel %vm135, %v922, %v924
    %937 = vrot.lane.b32.xlu0 %v893, 126
    %v938 = vpop.permute.xlu0 %937
    %939 = vrot.lane.b32.xlu0 %v894, 126
    %v940 = vpop.permute.xlu0 %939
    %941 = vrot.lane.b32.xlu0 %v895, 126
    %v942 = vpop.permute.xlu0 %941
    %943 = vrot.lane.b32.xlu0 %v896, 126
    %v944 = vpop.permute.xlu0 %943
    %945 = vrot.lane.b32.xlu0 %v897, 126
    %v946 = vpop.permute.xlu0 %945
    %947 = vrot.lane.b32.xlu0 %v898, 126
    %v948 = vpop.permute.xlu0 %947
    %949 = vrot.lane.b32.xlu0 %v899, 126
    %v950 = vpop.permute.xlu0 %949
    %951 = vrot.lane.b32.xlu0 %v900, 126
    %v952 = vpop.permute.xlu0 %951
    %v953 = vsel %vm164, %v938, %v940
    %v954 = vsel %vm164, %v942, %v944
    %v955 = vsel %vm164, %v946, %v948
    %v956 = vsel %vm164, %v950, %v952
    %965 = vmatpush.msra.mxu0 0.0
    %966 = vmatpush.msra.mxu0 0.0
    %967 = vmatpush.msra.mxu0 0.0
    %968 = vmatpush.msra.mxu0 0.0
    %969 = vmatpush.msra.mxu0 %v956
    %970 = vmatpush.msra.mxu0 %v955
    %971 = vmatpush.msra.mxu0 %v954
    %972 = vmatpush.msra.mxu0 %v953
    %973 = vmatpush.msra.mxu0 %v928
    %974 = vmatpush.msra.mxu0 %v927
    %975 = vmatpush.msra.mxu0 %v926
    %976 = vmatpush.msra.mxu0 %v925
    %977 = vmatpush.msra.mxu0 %v899
    %978 = vmatpush.msra.mxu0 %v897
    %979 = vmatpush.msra.mxu0 %v895
    %980 = vmatpush.msra.mxu0 %v893
    %981 = vmatmul.f32.gmra.mxu0 %v189
    %v982 = vpop.f32.mrf.mxu0
    %v983 = vadd.f32 %v180, %v982
    %984 = vmatmul.f32.gmra.mxu0 %v192
    %v985 = vpop.f32.mrf.mxu0
    %v986 = vadd.f32 %v185, %v985
    %987 = vdwg.mxu0
    %988 = vmatpush.msra.mxu0 0.0
    %989 = vmatpush.msra.mxu0 0.0
    %990 = vmatpush.msra.mxu0 0.0
    %991 = vmatpush.msra.mxu0 0.0
    %992 = vmatpush.msra.mxu0 %v952
    %993 = vmatpush.msra.mxu0 %v948
    %994 = vmatpush.msra.mxu0 %v944
    %995 = vmatpush.msra.mxu0 %v940
    %996 = vmatpush.msra.mxu0 %v924
    %997 = vmatpush.msra.mxu0 %v920
    %998 = vmatpush.msra.mxu0 %v916
    %999 = vmatpush.msra.mxu0 %v912
    %1000 = vmatpush.msra.mxu0 %v900
    %1001 = vmatpush.msra.mxu0 %v898
    %1002 = vmatpush.msra.mxu0 %v896
    %1003 = vmatpush.msra.mxu0 %v894
    %1004 = vmatmul.f32.gmra.mxu0 %v189
    %v1005 = vpop.f32.mrf.mxu0
    %v1006 = vadd.f32 %v180, %v1005
    %1007 = vmatmul.f32.gmra.mxu0 %v192
    %v1008 = vpop.f32.mrf.mxu0
    %v1009 = vadd.f32 %v185, %v1008
    %1010 = vdwg.mxu0
    %v1011 = vmax.f32 %v983, 0.0
    %v1012 = vmax.f32 %v1006, 0.0
    %v1013 = vmax.f32 %v986, 0.0
    %v1014 = vmax.f32 %v1009, 0.0
    %v1015 = vmul.f32 %v1011, %v246
    %v1016 = vmul.f32 %v1012, %v246
    %v1017 = vmul.f32 %v1013, %v250
    %v1018 = vmul.f32 %v1014, %v250
    %v1019 = vadd.f32 %v1015, %v258
    %v1020 = vadd.f32 %v1016, %v258
    %v1021 = vadd.f32 %v1017, %v262
    %v1022 = vadd.f32 %v1018, %v262
    %1027 = vrot.lane.b32.xlu0 %v1019, 127
    %v1028 = vpop.permute.xlu0 %1027
    %1029 = vrot.lane.b32.xlu0 %v1020, 127
    %v1030 = vpop.permute.xlu0 %1029
    %1031 = vrot.lane.b32.xlu0 %v1021, 127
    %v1032 = vpop.permute.xlu0 %1031
    %1033 = vrot.lane.b32.xlu0 %v1022, 127
    %v1034 = vpop.permute.xlu0 %1033
    %v1035 = vsel %vm135, %v1028, %v1030
    %v1036 = vsel %vm135, %v1032, %v1034
    %1041 = vrot.lane.b32.xlu0 %v1019, 126
    %v1042 = vpop.permute.xlu0 %1041
    %1043 = vrot.lane.b32.xlu0 %v1020, 126
    %v1044 = vpop.permute.xlu0 %1043
    %1045 = vrot.lane.b32.xlu0 %v1021, 126
    %v1046 = vpop.permute.xlu0 %1045
    %1047 = vrot.lane.b32.xlu0 %v1022, 126
    %v1048 = vpop.permute.xlu0 %1047
    %v1049 = vsel %vm164, %v1042, %v1044
    %v1050 = vsel %vm164, %v1046, %v1048
    %1055 = vrot.lane.b32.xlu0 %v1019, 125
    %v1056 = vpop.permute.xlu0 %1055
    %1057 = vrot.lane.b32.xlu0 %v1020, 125
    %v1058 = vpop.permute.xlu0 %1057
    %1059 = vrot.lane.b32.xlu0 %v1021, 125
    %v1060 = vpop.permute.xlu0 %1059
    %1061 = vrot.lane.b32.xlu0 %v1022, 125
    %v1062 = vpop.permute.xlu0 %1061
    %v1063 = vsel %vm308, %v1056, %v1058
    %v1064 = vsel %vm308, %v1060, %v1062
    %1069 = vrot.lane.b32.xlu0 %v1019, 124
    %v1070 = vpop.permute.xlu0 %1069
    %1071 = vrot.lane.b32.xlu0 %v1020, 124
    %v1072 = vpop.permute.xlu0 %1071
    %1073 = vrot.lane.b32.xlu0 %v1021, 124
    %v1074 = vpop.permute.xlu0 %1073
    %1075 = vrot.lane.b32.xlu0 %v1022, 124
    %v1076 = vpop.permute.xlu0 %1075
    %v1077 = vsel %vm323, %v1070, %v1072
    %v1078 = vsel %vm323, %v1074, %v1076
    %1083 = vmatpush.msra.mxu0 0.0
    %1084 = vmatpush.msra.mxu0 0.0
    %1085 = vmatpush.msra.mxu0 0.0
    %1086 = vmatpush.msra.mxu0 0.0
    %1087 = vmatpush.msra.mxu0 0.0
    %1088 = vmatpush.msra.mxu0 0.0
    %1089 = vmatpush.msra.mxu0 %v1078
    %1090 = vmatpush.msra.mxu0 %v1077
    %1091 = vmatpush.msra.mxu0 %v1064
    %1092 = vmatpush.msra.mxu0 %v1063
    %1093 = vmatpush.msra.mxu0 %v1050
    %1094 = vmatpush.msra.mxu0 %v1049
    %1095 = vmatpush.msra.mxu0 %v1036
    %1096 = vmatpush.msra.mxu0 %v1035
    %1097 = vmatpush.msra.mxu0 %v1021
    %1098 = vmatpush.msra.mxu0 %v1019
    %1099 = vmatmul.f32.gmra.mxu0 %v352
    %v1100 = vpop.f32.mrf.mxu0
    %v1101 = vadd.f32 %v333, %v1100
    %1102 = vmatmul.f32.gmra.mxu0 %v355
    %v1103 = vpop.f32.mrf.mxu0
    %v1104 = vadd.f32 %v338, %v1103
    %1105 = vmatmul.f32.gmra.mxu0 %v358
    %v1106 = vpop.f32.mrf.mxu0
    %v1107 = vadd.f32 %v343, %v1106
    %1108 = vmatmul.f32.gmra.mxu0 %v361
    %v1109 = vpop.f32.mrf.mxu0
    %v1110 = vadd.f32 %v348, %v1109
    %1111 = vdwg.mxu0
    %1112 = vmatpush.msra.mxu0 0.0
    %1113 = vmatpush.msra.mxu0 0.0
    %1114 = vmatpush.msra.mxu0 0.0
    %1115 = vmatpush.msra.mxu0 0.0
    %1116 = vmatpush.msra.mxu0 0.0
    %1117 = vmatpush.msra.mxu0 0.0
    %1118 = vmatpush.msra.mxu0 %v1076
    %1119 = vmatpush.msra.mxu0 %v1072
    %1120 = vmatpush.msra.mxu0 %v1062
    %1121 = vmatpush.msra.mxu0 %v1058
    %1122 = vmatpush.msra.mxu0 %v1048
    %1123 = vmatpush.msra.mxu0 %v1044
    %1124 = vmatpush.msra.mxu0 %v1034
    %1125 = vmatpush.msra.mxu0 %v1030
    %1126 = vmatpush.msra.mxu0 %v1022
    %1127 = vmatpush.msra.mxu0 %v1020
    %1128 = vmatmul.f32.gmra.mxu0 %v352
    %v1129 = vpop.f32.mrf.mxu0
    %v1130 = vadd.f32 %v333, %v1129
    %1131 = vmatmul.f32.gmra.mxu0 %v355
    %v1132 = vpop.f32.mrf.mxu0
    %v1133 = vadd.f32 %v338, %v1132
    %1134 = vmatmul.f32.gmra.mxu0 %v358
    %v1135 = vpop.f32.mrf.mxu0
    %v1136 = vadd.f32 %v343, %v1135
    %1137 = vmatmul.f32.gmra.mxu0 %v361
    %v1138 = vpop.f32.mrf.mxu0
    %v1139 = vadd.f32 %v348, %v1138
    %1140 = vdwg.mxu0
    %v1141 = vmax.f32 %v1101, 0.0
    %v1142 = vmax.f32 %v1130, 0.0
    %v1143 = vmax.f32 %v1104, 0.0
    %v1144 = vmax.f32 %v1133, 0.0
    %v1145 = vmax.f32 %v1107, 0.0
    %v1146 = vmax.f32 %v1136, 0.0
    %v1147 = vmax.f32 %v1110, 0.0
    %v1148 = vmax.f32 %v1139, 0.0
    %v1149 = vmul.f32 %v1141, %v431
    %v1150 = vmul.f32 %v1142, %v431
    %v1151 = vmul.f32 %v1143, %v435
    %v1152 = vmul.f32 %v1144, %v435
    %v1153 = vmul.f32 %v1145, %v439
    %v1154 = vmul.f32 %v1146, %v439
    %v1155 = vmul.f32 %v1147, %v443
    %v1156 = vmul.f32 %v1148, %v443
    %v1157 = vadd.f32 %v1149, %v455
    %v1158 = vadd.f32 %v1150, %v455
    %v1159 = vadd.f32 %v1151, %v459
    %v1160 = vadd.f32 %v1152, %v459
    %v1161 = vadd.f32 %v1153, %v463
    %v1162 = vadd.f32 %v1154, %v463
    %v1163 = vadd.f32 %v1155, %v467
    %v1164 = vadd.f32 %v1156, %v467
    %1173 = vrot.lane.b32.xlu0 %v1157, 127
    %v1174 = vpop.permute.xlu0 %1173
    %1175 = vrot.lane.b32.xlu0 %v1158, 127
    %v1176 = vpop.permute.xlu0 %1175
    %1177 = vrot.lane.b32.xlu0 %v1159, 127
    %v1178 = vpop.permute.xlu0 %1177
    %1179 = vrot.lane.b32.xlu0 %v1160, 127
    %v1180 = vpop.permute.xlu0 %1179
    %1181 = vrot.lane.b32.xlu0 %v1161, 127
    %v1182 = vpop.permute.xlu0 %1181
    %1183 = vrot.lane.b32.xlu0 %v1162, 127
    %v1184 = vpop.permute.xlu0 %1183
    %1185 = vrot.lane.b32.xlu0 %v1163, 127
    %v1186 = vpop.permute.xlu0 %1185
    %1187 = vrot.lane.b32.xlu0 %v1164, 127
    %v1188 = vpop.permute.xlu0 %1187
    %v1189 = vsel %vm135, %v1174, %v1176
    %v1190 = vsel %vm135, %v1178, %v1180
    %v1191 = vsel %vm135, %v1182, %v1184
    %v1192 = vsel %vm135, %v1186, %v1188
    %1197 = vrot.lane.b32.xlu0 %v1157, 126
    %v1198 = vpop.permute.xlu0 %1197
    %1199 = vrot.lane.b32.xlu0 %v1158, 126
    %v1200 = vpop.permute.xlu0 %1199
    %1201 = vrot.lane.b32.xlu0 %v1159, 126
    %v1202 = vpop.permute.xlu0 %1201
    %1203 = vrot.lane.b32.xlu0 %v1160, 126
    %v1204 = vpop.permute.xlu0 %1203
    %1205 = vrot.lane.b32.xlu0 %v1161, 126
    %v1206 = vpop.permute.xlu0 %1205
    %1207 = vrot.lane.b32.xlu0 %v1162, 126
    %v1208 = vpop.permute.xlu0 %1207
    %1209 = vrot.lane.b32.xlu0 %v1163, 126
    %v1210 = vpop.permute.xlu0 %1209
    %1211 = vrot.lane.b32.xlu0 %v1164, 126
    %v1212 = vpop.permute.xlu0 %1211
    %v1213 = vsel %vm164, %v1198, %v1200
    %v1214 = vsel %vm164, %v1202, %v1204
    %v1215 = vsel %vm164, %v1206, %v1208
    %v1216 = vsel %vm164, %v1210, %v1212
    %1221 = vrot.lane.b32.xlu0 %v1157, 125
    %v1222 = vpop.permute.xlu0 %1221
    %1223 = vrot.lane.b32.xlu0 %v1158, 125
    %v1224 = vpop.permute.xlu0 %1223
    %1225 = vrot.lane.b32.xlu0 %v1159, 125
    %v1226 = vpop.permute.xlu0 %1225
    %1227 = vrot.lane.b32.xlu0 %v1160, 125
    %v1228 = vpop.permute.xlu0 %1227
    %1229 = vrot.lane.b32.xlu0 %v1161, 125
    %v1230 = vpop.permute.xlu0 %1229
    %1231 = vrot.lane.b32.xlu0 %v1162, 125
    %v1232 = vpop.permute.xlu0 %1231
    %1233 = vrot.lane.b32.xlu0 %v1163, 125
    %v1234 = vpop.permute.xlu0 %1233
    %1235 = vrot.lane.b32.xlu0 %v1164, 125
    %v1236 = vpop.permute.xlu0 %1235
    %v1237 = vsel %vm308, %v1222, %v1224
    %v1238 = vsel %vm308, %v1226, %v1228
    %v1239 = vsel %vm308, %v1230, %v1232
    %v1240 = vsel %vm308, %v1234, %v1236
    %1245 = vrot.lane.b32.xlu0 %v1157, 124
    %v1246 = vpop.permute.xlu0 %1245
    %1247 = vrot.lane.b32.xlu0 %v1158, 124
    %v1248 = vpop.permute.xlu0 %1247
    %1249 = vrot.lane.b32.xlu0 %v1159, 124
    %v1250 = vpop.permute.xlu0 %1249
    %1251 = vrot.lane.b32.xlu0 %v1160, 124
    %v1252 = vpop.permute.xlu0 %1251
    %1253 = vrot.lane.b32.xlu0 %v1161, 124
    %v1254 = vpop.permute.xlu0 %1253
    %1255 = vrot.lane.b32.xlu0 %v1162, 124
    %v1256 = vpop.permute.xlu0 %1255
    %1257 = vrot.lane.b32.xlu0 %v1163, 124
    %v1258 = vpop.permute.xlu0 %1257
    %1259 = vrot.lane.b32.xlu0 %v1164, 124
    %v1260 = vpop.permute.xlu0 %1259
    %v1261 = vsel %vm323, %v1246, %v1248
    %v1262 = vsel %vm323, %v1250, %v1252
    %v1263 = vsel %vm323, %v1254, %v1256
    %v1264 = vsel %vm323, %v1258, %v1260
    %1269 = vrot.lane.b32.xlu0 %v1157, 123
    %v1270 = vpop.permute.xlu0 %1269
    %1271 = vrot.lane.b32.xlu0 %v1158, 123
    %v1272 = vpop.permute.xlu0 %1271
    %1273 = vrot.lane.b32.xlu0 %v1159, 123
    %v1274 = vpop.permute.xlu0 %1273
    %1275 = vrot.lane.b32.xlu0 %v1160, 123
    %v1276 = vpop.permute.xlu0 %1275
    %1277 = vrot.lane.b32.xlu0 %v1161, 123
    %v1278 = vpop.permute.xlu0 %1277
    %1279 = vrot.lane.b32.xlu0 %v1162, 123
    %v1280 = vpop.permute.xlu0 %1279
    %1281 = vrot.lane.b32.xlu0 %v1163, 123
    %v1282 = vpop.permute.xlu0 %1281
    %1283 = vrot.lane.b32.xlu0 %v1164, 123
    %v1284 = vpop.permute.xlu0 %1283
    %v1285 = vsel %vm597, %v1270, %v1272
    %v1286 = vsel %vm597, %v1274, %v1276
    %v1287 = vsel %vm597, %v1278, %v1280
    %v1288 = vsel %vm597, %v1282, %v1284
    %1293 = vrot.lane.b32.xlu0 %v1157, 122
    %v1294 = vpop.permute.xlu0 %1293
    %1295 = vrot.lane.b32.xlu0 %v1158, 122
    %v1296 = vpop.permute.xlu0 %1295
    %1297 = vrot.lane.b32.xlu0 %v1159, 122
    %v1298 = vpop.permute.xlu0 %1297
    %1299 = vrot.lane.b32.xlu0 %v1160, 122
    %v1300 = vpop.permute.xlu0 %1299
    %1301 = vrot.lane.b32.xlu0 %v1161, 122
    %v1302 = vpop.permute.xlu0 %1301
    %1303 = vrot.lane.b32.xlu0 %v1162, 122
    %v1304 = vpop.permute.xlu0 %1303
    %1305 = vrot.lane.b32.xlu0 %v1163, 122
    %v1306 = vpop.permute.xlu0 %1305
    %1307 = vrot.lane.b32.xlu0 %v1164, 122
    %v1308 = vpop.permute.xlu0 %1307
    %v1309 = vsel %vm622, %v1294, %v1296
    %v1310 = vsel %vm622, %v1298, %v1300
    %v1311 = vsel %vm622, %v1302, %v1304
    %v1312 = vsel %vm622, %v1306, %v1308
    %1317 = vmatpush.msra.mxu0 %v1240
    %1318 = vmatpush.msra.mxu0 %v1239
    %1319 = vmatpush.msra.mxu0 %v1238
    %1320 = vmatpush.msra.mxu0 %v1237
    %1321 = vmatpush.msra.mxu0 %v1216
    %1322 = vmatpush.msra.mxu0 %v1215
    %1323 = vmatpush.msra.mxu0 %v1214
    %1324 = vmatpush.msra.mxu0 %v1213
    %1325 = vmatpush.msra.mxu0 %v1192
    %1326 = vmatpush.msra.mxu0 %v1191
    %1327 = vmatpush.msra.mxu0 %v1190
    %1328 = vmatpush.msra.mxu0 %v1189
    %1329 = vmatpush.msra.mxu0 %v1163
    %1330 = vmatpush.msra.mxu0 %v1161
    %1331 = vmatpush.msra.mxu0 %v1159
    %1332 = vmatpush.msra.mxu0 %v1157
    %1333 = vmatmul.f32.gmra.mxu0 %v55
    %v1334 = vpop.f32.mrf.mxu0
    %v1335 = vadd.f32 %v634, %v1334
    %1336 = vmatmul.f32.gmra.mxu0 %v57
    %v1337 = vpop.f32.mrf.mxu0
    %v1338 = vadd.f32 %v639, %v1337
    %1339 = vmatmul.f32.gmra.mxu0 %v59
    %v1340 = vpop.f32.mrf.mxu0
    %v1341 = vadd.f32 %v644, %v1340
    %1342 = vmatmul.f32.gmra.mxu0 %v61
    %v1343 = vpop.f32.mrf.mxu0
    %v1344 = vadd.f32 %v649, %v1343
    %1345 = vmatmul.f32.gmra.mxu0 %v63
    %v1346 = vpop.f32.mrf.mxu0
    %v1347 = vadd.f32 %v654, %v1346
    %1348 = vmatmul.f32.gmra.mxu0 %v65
    %v1349 = vpop.f32.mrf.mxu0
    %v1350 = vadd.f32 %v659, %v1349
    %1351 = vmatmul.f32.gmra.mxu0 %v67
    %v1352 = vpop.f32.mrf.mxu0
    %v1353 = vadd.f32 %v664, %v1352
    %1354 = vmatmul.f32.gmra.mxu0 %v69
    %v1355 = vpop.f32.mrf.mxu0
    %v1356 = vadd.f32 %v669, %v1355
    %1357 = vdwg.mxu0
    %1358 = vmatpush.msra.mxu0 0.0
    %1359 = vmatpush.msra.mxu0 0.0
    %1360 = vmatpush.msra.mxu0 0.0
    %1361 = vmatpush.msra.mxu0 0.0
    %1362 = vmatpush.msra.mxu0 %v1312
    %1363 = vmatpush.msra.mxu0 %v1311
    %1364 = vmatpush.msra.mxu0 %v1310
    %1365 = vmatpush.msra.mxu0 %v1309
    %1366 = vmatpush.msra.mxu0 %v1288
    %1367 = vmatpush.msra.mxu0 %v1287
    %1368 = vmatpush.msra.mxu0 %v1286
    %1369 = vmatpush.msra.mxu0 %v1285
    %1370 = vmatpush.msra.mxu0 %v1264
    %1371 = vmatpush.msra.mxu0 %v1263
    %1372 = vmatpush.msra.mxu0 %v1262
    %1373 = vmatpush.msra.mxu0 %v1261
    %1374 = vmatmul.f32.gmra.mxu0 %v672
    %v1375 = vpop.f32.mrf.mxu0
    %v1376 = vadd.f32 %v1335, %v1375
    %1377 = vmatmul.f32.gmra.mxu0 %v675
    %v1378 = vpop.f32.mrf.mxu0
    %v1379 = vadd.f32 %v1338, %v1378
    %1380 = vmatmul.f32.gmra.mxu0 %v678
    %v1381 = vpop.f32.mrf.mxu0
    %v1382 = vadd.f32 %v1341, %v1381
    %1383 = vmatmul.f32.gmra.mxu0 %v681
    %v1384 = vpop.f32.mrf.mxu0
    %v1385 = vadd.f32 %v1344, %v1384
    %1386 = vmatmul.f32.gmra.mxu0 %v684
    %v1387 = vpop.f32.mrf.mxu0
    %v1388 = vadd.f32 %v1347, %v1387
    %1389 = vmatmul.f32.gmra.mxu0 %v687
    %v1390 = vpop.f32.mrf.mxu0
    %v1391 = vadd.f32 %v1350, %v1390
    %1392 = vmatmul.f32.gmra.mxu0 %v690
    %v1393 = vpop.f32.mrf.mxu0
    %v1394 = vadd.f32 %v1353, %v1393
    %1395 = vmatmul.f32.gmra.mxu0 %v693
    %v1396 = vpop.f32.mrf.mxu0
    %v1397 = vadd.f32 %v1356, %v1396
    %1398 = vdwg.mxu0
    %v1399 = vmax.f32 %v1376, 0.0
    %v1400 = vmax.f32 %v1379, 0.0
    %v1401 = vmax.f32 %v1382, 0.0
    %v1402 = vmax.f32 %v1385, 0.0
    %v1403 = vmax.f32 %v1388, 0.0
    %v1404 = vmax.f32 %v1391, 0.0
    %v1405 = vmax.f32 %v1394, 0.0
    %v1406 = vmax.f32 %v1397, 0.0
    %v1407 = vmul.f32 %v1399, %v787
    %v1408 = vmul.f32 %v1400, %v791
    %v1409 = vmul.f32 %v1401, %v795
    %v1410 = vmul.f32 %v1402, %v799
    %v1411 = vmul.f32 %v1403, %v803
    %v1412 = vmul.f32 %v1404, %v807
    %v1413 = vmul.f32 %v1405, %v811
    %v1414 = vmul.f32 %v1406, %v815
    %v1415 = vadd.f32 %v1407, %v827
    %v1416 = vadd.f32 %v1408, %v831
    %v1417 = vadd.f32 %v1409, %v835
    %v1418 = vadd.f32 %v1410, %v839
    %v1419 = vadd.f32 %v1411, %v843
    %v1420 = vadd.f32 %v1412, %v847
    %v1421 = vadd.f32 %v1413, %v851
    %v1422 = vadd.f32 %v1414, %v855
    %s1423 = scalar_lea.vmem [#allocation5], 64
    %1424 = vst [vmem:[%s1423] sm:$0xff] %v1415
    %1425 = vst [vmem:[%s1423 + $0x8] sm:$0xff] %v1416
    %1426 = vst [vmem:[%s1423 + $0x10] sm:$0xff] %v1417
    %1427 = vst [vmem:[%s1423 + $0x18] sm:$0xff] %v1418
    %1428 = vst [vmem:[%s1423 + $0x20] sm:$0xff] %v1419
    %1429 = vst [vmem:[%s1423 + $0x28] sm:$0xff] %v1420
    %1430 = vst [vmem:[%s1423 + $0x30] sm:$0xff] %v1421
    %1431 = vst [vmem:[%s1423 + $0x38] sm:$0xff] %v1422
    // Predicated region
    $region34: #{tpu_custom_call.1} parent=1 // pred_check
      _
    $region35: #{tpu_custom_call.1} parent=1 // pred_check_branch
      %1433 = sbr.rel (0) target = $region37
    $region36: #{tpu_custom_call.1} parent=1 // pred_region
      %1435 = vsyncadd [#allocation4], 0
      %s1436 = sshll.u32 [#allocation5], 4
      %s1437 = int_to_ptr.vmem [resolvable:$true] %s1436
      %s1438 = sshll.u32 %s7, 4
      %s1439 = int_to_ptr.hbm [resolvable:$true] %s1438
      %1444 = dma.vmem_to_hbm [thread:$0]  %s1437, 2048, %s1439, [#allocation4], 128, 128, 8
    $region37: #{tpu_custom_call.1} parent=1 // pred_fallthru
      _
    // Predicated region
    $region38: #{tpu_custom_call.1} parent=1 // pred_check
      _
    $region39: #{tpu_custom_call.1} parent=1 // pred_check_branch
      %1446 = sbr.rel (0) target = $region41
    $region40: #{tpu_custom_call.1} parent=1 // pred_region
      %1448 = dma.done [#allocation4], 2048
    $region41: #{tpu_custom_call.1} parent=1 // pred_fallthru
      _
    %1449 = vsyncpa [#allocation3], 1
    %1450 = vsyncpa [#allocation4], 1

</llo_original>
